<compile_context>
chip_gen: v6e
topology: v6e:2x2x1
jax: 0.10.0
libtpu: 0.0.40
codegen_flags: <defaults>
</compile_context>

<pallas_src>
import functools

import jax
import jax.numpy as jnp
from jax import lax
from jax.experimental import pallas as pl
from jax.experimental.pallas import tpu as pltpu


def _round_up(x, m):
    return ((x + m - 1) // m) * m


# --------------------------------------------------------------------------- #
# Kernel
# --------------------------------------------------------------------------- #
def rnn4rl_kernel(sa_ref, rtg_ref, wrbr_ref, emb_ref, wihr_ref, whh_ref,
                  bhn_ref, wp_ref, bp_ref, wo_ref, bo_ref,
                  out_ref,
                  xp_ref, hs_ref,
                  *, L, Bp):
    LBp = sa_ref.shape[0]                    # L * Bp
    SAp = emb_ref.shape[0]                   # padded (n_states + n_actions)
    H = bhn_ref.shape[1]                     # true hidden size
    Gp = whh_ref.shape[1]                    # packed gate width (>= 3H, mult of 128)

    # -------------------- non-recurrent prologue -------------------------- #
    # Fused embedding lookup + tanh + input projection + input bias via a
    # single "two-hot" matmul (action indices are pre-offset by n_states).
    sa = sa_ref[...]                                                     # (LBp, 2) i32
    iota = lax.broadcasted_iota(jnp.int32, (LBp, SAp), 1)
    two_hot = ((iota == sa[:, 0:1]) | (iota == sa[:, 1:2])
               ).astype(jnp.bfloat16)                                    # (LBp, SAp)

    wr = wrbr_ref[0:1, :]                                                # (1, E)
    br = wrbr_ref[1:2, :]                                                # (1, E)
    x_r = jnp.tanh(rtg_ref[...] * wr + br)                               # (LBp, E) f32

    xp_ref[...] = (
        jnp.dot(two_hot, emb_ref[...], preferred_element_type=jnp.float32)
        + jnp.dot(x_r.astype(jnp.bfloat16), wihr_ref[...],
                  preferred_element_type=jnp.float32))                   # (LBp, Gp)

    # -------------------- serial GRU recurrence --------------------------- #
    # PyTorch gate order/semantics (r, z, n); gates packed contiguously at
    # lane offsets 0/H/2H of a single Gp-lane tile. Only h @ whh + gate math
    # remain on the serial critical path. Hoist the n-gate hidden bias once.
    bhn = jnp.broadcast_to(bhn_ref[...], (Bp, H))                        # (Bp, H) f32
    whh = whh_ref[...]                                                   # (H, Gp) bf16
    h = jnp.zeros((Bp, H), jnp.float32)
    for t in range(L):                                                   # L small & static
        x_t = xp_ref[pl.ds(t * Bp, Bp), :]                               # (Bp, Gp)
        h_proj = jnp.dot(h.astype(jnp.bfloat16), whh,
                         preferred_element_type=jnp.float32)             # (Bp, Gp)
        g = x_t + h_proj                                                 # r/z pre-acts
        r = jax.nn.sigmoid(g[:, 0:H])
        z = jax.nn.sigmoid(g[:, H:2 * H])
        n = jnp.tanh(x_t[:, 2 * H:3 * H] + r * (h_proj[:, 2 * H:3 * H] + bhn))
        h = (1.0 - z) * n + z * h                                        # (Bp, H)
        hs_ref[pl.ds(t * Bp, Bp), :] = h

    # -------------------- non-recurrent epilogue -------------------------- #
    hs = hs_ref[...].astype(jnp.bfloat16)                                # (LBp, H)
    p = jnp.maximum(jnp.dot(hs, wp_ref[...],
                            preferred_element_type=jnp.float32) + bp_ref[...], 0.0)
    out_ref[...] = (jnp.dot(p.astype(jnp.bfloat16), wo_ref[...],
                            preferred_element_type=jnp.float32)
                    + bo_ref[...]).astype(out_ref.dtype)                 # (LBp, Ap)


# --------------------------------------------------------------------------- #
# One-time weight preparation (cache the result and reuse across calls).
# --------------------------------------------------------------------------- #
def prepare_params(params, dtype=jnp.bfloat16):
    f32 = jnp.float32
    S, E = params["state_table"].shape
    A_tab = params["action_table"].shape[0]
    H = params["w_hh"].shape[1]
    P = params["w_p"].shape[0]
    A = params["w_o"].shape[0]

    Gp = _round_up(3 * H, 128)               # packed gate tile width
    Pp = _round_up(P, 128)
    Ap = _round_up(A, 128)
    SAp = _round_up(S + A_tab, 16)

    def pad_cols(x, width):
        return jnp.pad(x, ((0, 0), (0, width - x.shape[1])))

    # w_ih input-feature ordering is [rtg | state | action], each width E.
    wih_t = params["w_ih"].T.astype(f32)                                  # (3E, 3H)
    wih_r, wih_s, wih_a = wih_t[0:E], wih_t[E:2 * E], wih_t[2 * E:3 * E]

    # Fold b_hh's r/z components into the input bias; keep only b_hn separate.
    b_ih = params["b_ih"].astype(f32)
    b_hh = params["b_hh"].astype(f32)
    bih_eff = jnp.concatenate([b_ih[0:2 * H] + b_hh[0:2 * H], b_ih[2 * H:3 * H]])
    bhn = b_hh[2 * H:3 * H][None, :]                                      # (1, H)

    # Fuse embedding tables + tanh + input projection (+ fused input bias on
    # the state rows, so it is added exactly once per sample).
    stab_proj = jnp.tanh(params["state_table"].astype(f32)) @ wih_s + bih_eff[None, :]
    atab_proj = jnp.tanh(params["action_table"].astype(f32)) @ wih_a
    emb_proj = (jnp.zeros((SAp, 3 * H), f32)
                .at[0:S].set(stab_proj).at[S:S + A_tab].set(atab_proj))

    return {
        "emb_proj": pad_cols(emb_proj, Gp).astype(dtype),                 # (SAp, Gp)
        "wih_r": pad_cols(wih_r, Gp).astype(dtype),                       # (E, Gp)
        "whh": pad_cols(params["w_hh"].T.astype(f32), Gp).astype(dtype),  # (H, Gp)
        "bhn": bhn,                                                       # (1, H) f32
        "wrbr": jnp.concatenate([params["w_r"].T.astype(f32),
                                 params["b_r"][None, :].astype(f32)], 0), # (2, E) f32
        "wp": pad_cols(params["w_p"].T.astype(f32), Pp).astype(dtype),    # (H, Pp)
        "bp": pad_cols(params["b_p"][None, :].astype(f32), Pp),           # (1, Pp) f32
        "wo": (jnp.zeros((Pp, Ap), f32)
               .at[0:P, 0:A].set(params["w_o"].T.astype(f32))).astype(dtype),  # (Pp, Ap)
        "bo": pad_cols(params["b_o"][None, :].astype(f32), Ap),           # (1, Ap) f32
    }


# --------------------------------------------------------------------------- #
# Jitted forward: input flattening + pallas_call only.
# --------------------------------------------------------------------------- #
@functools.partial(jax.jit, static_argnames=("n_states", "n_actions"))
def rnn4rl_forward(prepped, states, actions, rtgs, *, n_states, n_actions):
    B, L = states.shape
    H, Gp = prepped["whh"].shape
    Ap = prepped["wo"].shape[1]

    Bp = _round_up(B, 8)
    LBp = L * Bp
    pad_b = Bp - B

    # Padded batch rows run a harmless dummy trajectory (index 0, rtg 0).
    states_p = jnp.pad(states.astype(jnp.int32), ((0, pad_b), (0, 0)))
    actions_p = jnp.pad(actions.astype(jnp.int32), ((0, pad_b), (0, 0))) + n_states
    rtgs_p = jnp.pad(rtgs.astype(jnp.float32), ((0, pad_b), (0, 0)))

    # Time-major flatten: row index = t * Bp + b.
    sa_flat = jnp.transpose(jnp.stack([states_p, actions_p], axis=-1),
                            (1, 0, 2)).reshape(LBp, 2)
    r_flat = jnp.transpose(rtgs_p, (1, 0)).reshape(LBp, 1)

    vmem = pl.BlockSpec(memory_space=pltpu.MemorySpace.VMEM)
    out = pl.pallas_call(
        functools.partial(rnn4rl_kernel, L=L, Bp=Bp),
        out_shape=jax.ShapeDtypeStruct((LBp, Ap), jnp.float32),
        in_specs=[vmem] * 11,
        out_specs=vmem,
        scratch_shapes=[pltpu.VMEM((LBp, Gp), jnp.float32),   # x-projections
                        pltpu.VMEM((LBp, H), jnp.float32)],   # hidden states
    )(sa_flat, r_flat, prepped["wrbr"], prepped["emb_proj"], prepped["wih_r"],
      prepped["whh"], prepped["bhn"], prepped["wp"], prepped["bp"],
      prepped["wo"], prepped["bo"])

    out = out.reshape(L, Bp, Ap)[:, :B, :n_actions]           # strip padding
    return jnp.transpose(out, (1, 0, 2))                      # (B, L, A)


# --------------------------------------------------------------------------- #
# Pure-JAX reference (PyTorch forward semantics) and param init.
# --------------------------------------------------------------------------- #
def rnn4rl_reference(params, states, actions, rtgs):
    B, L = states.shape
    H = params["w_hh"].shape[1]
    se = jnp.tanh(params["state_table"][states])
    ae = jnp.tanh(params["action_table"][actions])
    re = jnp.tanh(rtgs[..., None] @ params["w_r"].T + params["b_r"])
    x = jnp.concatenate([re, se, ae], axis=-1)                # (B, L, 3E)

    def gru_step(h, x_t):
        xp = x_t @ params["w_ih"].T + params["b_ih"]
        hp = h @ params["w_hh"].T + params["b_hh"]
        r = jax.nn.sigmoid(xp[:, :H] + hp[:, :H])
        z = jax.nn.sigmoid(xp[:, H:2 * H] + hp[:, H:2 * H])
        n = jnp.tanh(xp[:, 2 * H:] + r * hp[:, 2 * H:])
        h_new = (1.0 - z) * n + z * h
        return h_new, h_new

    h0 = jnp.zeros((B, H), jnp.float32)
    _, hs = lax.scan(gru_step, h0, jnp.transpose(x, (1, 0, 2)))
    hs = jnp.transpose(hs, (1, 0, 2))                         # (B, L, H)
    p = jnp.maximum(hs @ params["w_p"].T + params["b_p"], 0.0)
    return p @ params["w_o"].T + params["b_o"]


def init_params(key, n_states, n_actions, embedding_dim, hidden_size, project_size):
    ks = jax.random.split(key, 12)
    s = 0.1
    return {
        "state_table": s * jax.random.normal(ks[0], (n_states, embedding_dim), jnp.float32),
        "action_table": s * jax.random.normal(ks[1], (n_actions, embedding_dim), jnp.float32),
        "w_r": s * jax.random.normal(ks[2], (embedding_dim, 1), jnp.float32),
        "b_r": s * jax.random.normal(ks[3], (embedding_dim,), jnp.float32),
        "w_ih": s * jax.random.normal(ks[4], (3 * hidden_size, 3 * embedding_dim), jnp.float32),
        "w_hh": s * jax.random.normal(ks[5], (3 * hidden_size, hidden_size), jnp.float32),
        "b_ih": s * jax.random.normal(ks[6], (3 * hidden_size,), jnp.float32),
        "b_hh": s * jax.random.normal(ks[7], (3 * hidden_size,), jnp.float32),
        "w_p": s * jax.random.normal(ks[8], (project_size, hidden_size), jnp.float32),
        "b_p": s * jax.random.normal(ks[9], (project_size,), jnp.float32),
        "w_o": s * jax.random.normal(ks[10], (n_actions, project_size), jnp.float32),
        "b_o": s * jax.random.normal(ks[11], (n_actions,), jnp.float32),
    }


if __name__ == "__main__":
    n_states, n_actions = 16, 4
    embedding_dim, hidden_size, project_size = 32, 32, 32
    B, L = 2, 8

    key = jax.random.PRNGKey(0)
    kp, ks, ka, kr = jax.random.split(key, 4)
    params = init_params(kp, n_states, n_actions, embedding_dim, hidden_size, project_size)

    states = jax.random.randint(ks, (B, L), 0, n_states, dtype=jnp.int32)
    actions = jax.random.randint(ka, (B, L), 0, n_actions, dtype=jnp.int32)
    rtgs = jax.random.normal(kr, (B, L), jnp.float32)

    # One-time (cached) weight prep; reuse `prepped` across all forward calls.
    prepped = prepare_params(params)
    prepped = jax.tree_util.tree_map(jax.block_until_ready, prepped)

    out = rnn4rl_forward(prepped, states, actions, rtgs,
                         n_states=n_states, n_actions=n_actions)
    out = jax.block_until_ready(out)

    ref = rnn4rl_reference(params, states, actions, rtgs)
    assert out.shape == (B, L, n_actions), out.shape
    max_err = float(jnp.max(jnp.abs(out - ref)))
    # bf16 MXU operands -> relaxed tolerance vs the f32 reference.
    assert max_err < 2e-2, max_err

    print("KERNEL_OK")
</pallas_src>

<mosaic_0001>
module attributes {stable_mosaic.version = 11 : i64} {
  func.func @rnn4rl_kernel(%arg0: memref<64x2xi32, #tpu.memory_space<vmem>>, %arg1: memref<64x1xf32, #tpu.memory_space<vmem>>, %arg2: memref<2x32xf32, #tpu.memory_space<vmem>>, %arg3: memref<32x128xbf16, #tpu.memory_space<vmem>>, %arg4: memref<32x128xbf16, #tpu.memory_space<vmem>>, %arg5: memref<32x128xbf16, #tpu.memory_space<vmem>>, %arg6: memref<1x32xf32, #tpu.memory_space<vmem>>, %arg7: memref<32x128xbf16, #tpu.memory_space<vmem>>, %arg8: memref<1x128xf32, #tpu.memory_space<vmem>>, %arg9: memref<128x128xbf16, #tpu.memory_space<vmem>>, %arg10: memref<1x128xf32, #tpu.memory_space<vmem>>, %arg11: memref<64x128xf32, #tpu.memory_space<vmem>>, %arg12: memref<64x128xf32, #tpu.memory_space<vmem>>, %arg13: memref<64x32xf32, #tpu.memory_space<vmem>>) attributes {dimension_semantics = [], scalar_prefetch = 0 : i64, scratch_operands = 2 : i64, tpu.core_type = #tpu.core_type<tc>} {
    %c0 = arith.constant 0 : index
    %c0_0 = arith.constant 0 : index
    %0 = vector.load %arg0[%c0, %c0_0] : memref<64x2xi32, #tpu.memory_space<vmem>>, vector<64x2xi32>
    %1 = tpu.iota {dimensions = array<i32: 1>} : vector<64x32xi32>
    %2 = vector.extract_strided_slice %0 {offsets = [0, 0], sizes = [64, 1], strides = [1, 1]} : vector<64x2xi32> to vector<64x1xi32>
    %3 = vector.broadcast %2 : vector<64x1xi32> to vector<64x32xi32>
    %4 = arith.cmpi eq, %1, %3 : vector<64x32xi32>
    %5 = vector.extract_strided_slice %0 {offsets = [0, 1], sizes = [64, 1], strides = [1, 1]} : vector<64x2xi32> to vector<64x1xi32>
    %6 = vector.broadcast %5 : vector<64x1xi32> to vector<64x32xi32>
    %7 = arith.cmpi eq, %1, %6 : vector<64x32xi32>
    %8 = arith.ori %4, %7 : vector<64x32xi1>
    %9 = arith.extui %8 : vector<64x32xi1> to vector<64x32xi32>
    %10 = arith.sitofp %9 : vector<64x32xi32> to vector<64x32xf32>
    %11 = arith.truncf %10 : vector<64x32xf32> to vector<64x32xbf16>
    %c0_1 = arith.constant 0 : index
    %c0_2 = arith.constant 0 : index
    %12 = vector.load %arg2[%c0_1, %c0_2] : memref<2x32xf32, #tpu.memory_space<vmem>>, vector<1x32xf32>
    %c1 = arith.constant 1 : index
    %c0_3 = arith.constant 0 : index
    %13 = vector.load %arg2[%c1, %c0_3] : memref<2x32xf32, #tpu.memory_space<vmem>>, vector<1x32xf32>
    %c0_4 = arith.constant 0 : index
    %c0_5 = arith.constant 0 : index
    %14 = vector.load %arg1[%c0_4, %c0_5] : memref<64x1xf32, #tpu.memory_space<vmem>>, vector<64x1xf32>
    %15 = vector.broadcast %14 : vector<64x1xf32> to vector<64x32xf32>
    %16 = vector.broadcast %12 : vector<1x32xf32> to vector<64x32xf32>
    %17 = arith.mulf %15, %16 : vector<64x32xf32>
    %18 = vector.broadcast %13 : vector<1x32xf32> to vector<64x32xf32>
    %19 = arith.addf %17, %18 : vector<64x32xf32>
    %20 = math.tanh %19 : vector<64x32xf32>
    %c0_6 = arith.constant 0 : index
    %c0_7 = arith.constant 0 : index
    %21 = vector.load %arg3[%c0_6, %c0_7] : memref<32x128xbf16, #tpu.memory_space<vmem>>, vector<32x128xbf16>
    %cst = arith.constant dense<0.000000e+00> : vector<64x128xf32>
    %22 = tpu.matmul %11, %21, %cst {dimension_numbers = #tpu.dot_dimension_numbers<[1], [0], [0], [1], [0, 0, 1, 1], [], []>} : vector<64x32xbf16>, vector<32x128xbf16>, vector<64x128xf32> -> vector<64x128xf32>
    %23 = arith.truncf %20 : vector<64x32xf32> to vector<64x32xbf16>
    %c0_8 = arith.constant 0 : index
    %c0_9 = arith.constant 0 : index
    %24 = vector.load %arg4[%c0_8, %c0_9] : memref<32x128xbf16, #tpu.memory_space<vmem>>, vector<32x128xbf16>
    %cst_10 = arith.constant dense<0.000000e+00> : vector<64x128xf32>
    %25 = tpu.matmul %23, %24, %cst_10 {dimension_numbers = #tpu.dot_dimension_numbers<[1], [0], [0], [1], [0, 0, 1, 1], [], []>} : vector<64x32xbf16>, vector<32x128xbf16>, vector<64x128xf32> -> vector<64x128xf32>
    %26 = arith.addf %22, %25 : vector<64x128xf32>
    %c0_11 = arith.constant 0 : index
    %c0_12 = arith.constant 0 : index
    %27 = vector.load %arg12[%c0_11, %c0_12] : memref<64x128xf32, #tpu.memory_space<vmem>>, vector<64x128xf32>
    tpu.vector_store %arg12[%c0_11, %c0_12], %26 {strides = array<i32>} : memref<64x128xf32, #tpu.memory_space<vmem>>, vector<64x128xf32>,
    %c0_13 = arith.constant 0 : index
    %c0_14 = arith.constant 0 : index
    %28 = vector.load %arg6[%c0_13, %c0_14] : memref<1x32xf32, #tpu.memory_space<vmem>>, vector<1x32xf32>
    %29 = vector.shape_cast %28 : vector<1x32xf32> to vector<1x32xf32>
    %30 = vector.broadcast %29 : vector<1x32xf32> to vector<8x32xf32>
    %c0_15 = arith.constant 0 : index
    %c0_16 = arith.constant 0 : index
    %31 = vector.load %arg5[%c0_15, %c0_16] : memref<32x128xbf16, #tpu.memory_space<vmem>>, vector<32x128xbf16>
    %cst_17 = arith.constant 0.000000e+00 : f32
    %32 = vector.broadcast %cst_17 : f32 to vector<8x32xf32>
    %c0_18 = arith.constant 0 : index
    %c0_19 = arith.constant 0 : index
    %33 = vector.load %arg12[%c0_18, %c0_19] : memref<64x128xf32, #tpu.memory_space<vmem>>, vector<8x128xf32>
    %34 = arith.truncf %32 : vector<8x32xf32> to vector<8x32xbf16>
    %cst_20 = arith.constant dense<0.000000e+00> : vector<8x128xf32>
    %35 = tpu.matmul %34, %31, %cst_20 {dimension_numbers = #tpu.dot_dimension_numbers<[1], [0], [0], [1], [0, 0, 1, 1], [], []>} : vector<8x32xbf16>, vector<32x128xbf16>, vector<8x128xf32> -> vector<8x128xf32>
    %36 = arith.addf %33, %35 : vector<8x128xf32>
    %37 = vector.extract_strided_slice %36 {offsets = [0, 0], sizes = [8, 32], strides = [1, 1]} : vector<8x128xf32> to vector<8x32xf32>
    %38 = arith.negf %37 : vector<8x32xf32>
    %39 = math.exp %38 : vector<8x32xf32>
    %cst_21 = arith.constant 1.000000e+00 : f32
    %40 = vector.broadcast %cst_21 : f32 to vector<8x32xf32>
    %41 = arith.addf %40, %39 : vector<8x32xf32>
    %42 = arith.divf %40, %41 : vector<8x32xf32>
    %43 = vector.extract_strided_slice %36 {offsets = [0, 32], sizes = [8, 32], strides = [1, 1]} : vector<8x128xf32> to vector<8x32xf32>
    %44 = arith.negf %43 : vector<8x32xf32>
    %45 = math.exp %44 : vector<8x32xf32>
    %cst_22 = arith.constant 1.000000e+00 : f32
    %46 = vector.broadcast %cst_22 : f32 to vector<8x32xf32>
    %47 = arith.addf %46, %45 : vector<8x32xf32>
    %48 = arith.divf %46, %47 : vector<8x32xf32>
    %49 = vector.extract_strided_slice %33 {offsets = [0, 64], sizes = [8, 32], strides = [1, 1]} : vector<8x128xf32> to vector<8x32xf32>
    %50 = vector.extract_strided_slice %35 {offsets = [0, 64], sizes = [8, 32], strides = [1, 1]} : vector<8x128xf32> to vector<8x32xf32>
    %51 = arith.addf %50, %30 : vector<8x32xf32>
    %52 = arith.mulf %42, %51 : vector<8x32xf32>
    %53 = arith.addf %49, %52 : vector<8x32xf32>
    %54 = math.tanh %53 : vector<8x32xf32>
    %cst_23 = arith.constant 1.000000e+00 : f32
    %55 = vector.broadcast %cst_23 : f32 to vector<8x32xf32>
    %56 = arith.subf %55, %48 : vector<8x32xf32>
    %57 = arith.mulf %56, %54 : vector<8x32xf32>
    %58 = arith.mulf %48, %32 : vector<8x32xf32>
    %59 = arith.addf %57, %58 : vector<8x32xf32>
    %c0_24 = arith.constant 0 : index
    %c0_25 = arith.constant 0 : index
    %60 = vector.load %arg13[%c0_24, %c0_25] : memref<64x32xf32, #tpu.memory_space<vmem>>, vector<8x32xf32>
    tpu.vector_store %arg13[%c0_24, %c0_25], %59 {strides = array<i32>} : memref<64x32xf32, #tpu.memory_space<vmem>>, vector<8x32xf32>,
    %c8 = arith.constant 8 : index
    %c0_26 = arith.constant 0 : index
    %61 = vector.load %arg12[%c8, %c0_26] : memref<64x128xf32, #tpu.memory_space<vmem>>, vector<8x128xf32>
    %62 = arith.truncf %59 : vector<8x32xf32> to vector<8x32xbf16>
    %cst_27 = arith.constant dense<0.000000e+00> : vector<8x128xf32>
    %63 = tpu.matmul %62, %31, %cst_27 {dimension_numbers = #tpu.dot_dimension_numbers<[1], [0], [0], [1], [0, 0, 1, 1], [], []>} : vector<8x32xbf16>, vector<32x128xbf16>, vector<8x128xf32> -> vector<8x128xf32>
    %64 = arith.addf %61, %63 : vector<8x128xf32>
    %65 = vector.extract_strided_slice %64 {offsets = [0, 0], sizes = [8, 32], strides = [1, 1]} : vector<8x128xf32> to vector<8x32xf32>
    %66 = arith.negf %65 : vector<8x32xf32>
    %67 = math.exp %66 : vector<8x32xf32>
    %cst_28 = arith.constant 1.000000e+00 : f32
    %68 = vector.broadcast %cst_28 : f32 to vector<8x32xf32>
    %69 = arith.addf %68, %67 : vector<8x32xf32>
    %70 = arith.divf %68, %69 : vector<8x32xf32>
    %71 = vector.extract_strided_slice %64 {offsets = [0, 32], sizes = [8, 32], strides = [1, 1]} : vector<8x128xf32> to vector<8x32xf32>
    %72 = arith.negf %71 : vector<8x32xf32>
    %73 = math.exp %72 : vector<8x32xf32>
    %cst_29 = arith.constant 1.000000e+00 : f32
    %74 = vector.broadcast %cst_29 : f32 to vector<8x32xf32>
    %75 = arith.addf %74, %73 : vector<8x32xf32>
    %76 = arith.divf %74, %75 : vector<8x32xf32>
    %77 = vector.extract_strided_slice %61 {offsets = [0, 64], sizes = [8, 32], strides = [1, 1]} : vector<8x128xf32> to vector<8x32xf32>
    %78 = vector.extract_strided_slice %63 {offsets = [0, 64], sizes = [8, 32], strides = [1, 1]} : vector<8x128xf32> to vector<8x32xf32>
    %79 = arith.addf %78, %30 : vector<8x32xf32>
    %80 = arith.mulf %70, %79 : vector<8x32xf32>
    %81 = arith.addf %77, %80 : vector<8x32xf32>
    %82 = math.tanh %81 : vector<8x32xf32>
    %cst_30 = arith.constant 1.000000e+00 : f32
    %83 = vector.broadcast %cst_30 : f32 to vector<8x32xf32>
    %84 = arith.subf %83, %76 : vector<8x32xf32>
    %85 = arith.mulf %84, %82 : vector<8x32xf32>
    %86 = arith.mulf %76, %59 : vector<8x32xf32>
    %87 = arith.addf %85, %86 : vector<8x32xf32>
    %c8_31 = arith.constant 8 : index
    %c0_32 = arith.constant 0 : index
    %88 = vector.load %arg13[%c8_31, %c0_32] : memref<64x32xf32, #tpu.memory_space<vmem>>, vector<8x32xf32>
    tpu.vector_store %arg13[%c8_31, %c0_32], %87 {strides = array<i32>} : memref<64x32xf32, #tpu.memory_space<vmem>>, vector<8x32xf32>,
    %c16 = arith.constant 16 : index
    %c0_33 = arith.constant 0 : index
    %89 = vector.load %arg12[%c16, %c0_33] : memref<64x128xf32, #tpu.memory_space<vmem>>, vector<8x128xf32>
    %90 = arith.truncf %87 : vector<8x32xf32> to vector<8x32xbf16>
    %cst_34 = arith.constant dense<0.000000e+00> : vector<8x128xf32>
    %91 = tpu.matmul %90, %31, %cst_34 {dimension_numbers = #tpu.dot_dimension_numbers<[1], [0], [0], [1], [0, 0, 1, 1], [], []>} : vector<8x32xbf16>, vector<32x128xbf16>, vector<8x128xf32> -> vector<8x128xf32>
    %92 = arith.addf %89, %91 : vector<8x128xf32>
    %93 = vector.extract_strided_slice %92 {offsets = [0, 0], sizes = [8, 32], strides = [1, 1]} : vector<8x128xf32> to vector<8x32xf32>
    %94 = arith.negf %93 : vector<8x32xf32>
    %95 = math.exp %94 : vector<8x32xf32>
    %cst_35 = arith.constant 1.000000e+00 : f32
    %96 = vector.broadcast %cst_35 : f32 to vector<8x32xf32>
    %97 = arith.addf %96, %95 : vector<8x32xf32>
    %98 = arith.divf %96, %97 : vector<8x32xf32>
    %99 = vector.extract_strided_slice %92 {offsets = [0, 32], sizes = [8, 32], strides = [1, 1]} : vector<8x128xf32> to vector<8x32xf32>
    %100 = arith.negf %99 : vector<8x32xf32>
    %101 = math.exp %100 : vector<8x32xf32>
    %cst_36 = arith.constant 1.000000e+00 : f32
    %102 = vector.broadcast %cst_36 : f32 to vector<8x32xf32>
    %103 = arith.addf %102, %101 : vector<8x32xf32>
    %104 = arith.divf %102, %103 : vector<8x32xf32>
    %105 = vector.extract_strided_slice %89 {offsets = [0, 64], sizes = [8, 32], strides = [1, 1]} : vector<8x128xf32> to vector<8x32xf32>
    %106 = vector.extract_strided_slice %91 {offsets = [0, 64], sizes = [8, 32], strides = [1, 1]} : vector<8x128xf32> to vector<8x32xf32>
    %107 = arith.addf %106, %30 : vector<8x32xf32>
    %108 = arith.mulf %98, %107 : vector<8x32xf32>
    %109 = arith.addf %105, %108 : vector<8x32xf32>
    %110 = math.tanh %109 : vector<8x32xf32>
    %cst_37 = arith.constant 1.000000e+00 : f32
    %111 = vector.broadcast %cst_37 : f32 to vector<8x32xf32>
    %112 = arith.subf %111, %104 : vector<8x32xf32>
    %113 = arith.mulf %112, %110 : vector<8x32xf32>
    %114 = arith.mulf %104, %87 : vector<8x32xf32>
    %115 = arith.addf %113, %114 : vector<8x32xf32>
    %c16_38 = arith.constant 16 : index
    %c0_39 = arith.constant 0 : index
    %116 = vector.load %arg13[%c16_38, %c0_39] : memref<64x32xf32, #tpu.memory_space<vmem>>, vector<8x32xf32>
    tpu.vector_store %arg13[%c16_38, %c0_39], %115 {strides = array<i32>} : memref<64x32xf32, #tpu.memory_space<vmem>>, vector<8x32xf32>,
    %c24 = arith.constant 24 : index
    %c0_40 = arith.constant 0 : index
    %117 = vector.load %arg12[%c24, %c0_40] : memref<64x128xf32, #tpu.memory_space<vmem>>, vector<8x128xf32>
    %118 = arith.truncf %115 : vector<8x32xf32> to vector<8x32xbf16>
    %cst_41 = arith.constant dense<0.000000e+00> : vector<8x128xf32>
    %119 = tpu.matmul %118, %31, %cst_41 {dimension_numbers = #tpu.dot_dimension_numbers<[1], [0], [0], [1], [0, 0, 1, 1], [], []>} : vector<8x32xbf16>, vector<32x128xbf16>, vector<8x128xf32> -> vector<8x128xf32>
    %120 = arith.addf %117, %119 : vector<8x128xf32>
    %121 = vector.extract_strided_slice %120 {offsets = [0, 0], sizes = [8, 32], strides = [1, 1]} : vector<8x128xf32> to vector<8x32xf32>
    %122 = arith.negf %121 : vector<8x32xf32>
    %123 = math.exp %122 : vector<8x32xf32>
    %cst_42 = arith.constant 1.000000e+00 : f32
    %124 = vector.broadcast %cst_42 : f32 to vector<8x32xf32>
    %125 = arith.addf %124, %123 : vector<8x32xf32>
    %126 = arith.divf %124, %125 : vector<8x32xf32>
    %127 = vector.extract_strided_slice %120 {offsets = [0, 32], sizes = [8, 32], strides = [1, 1]} : vector<8x128xf32> to vector<8x32xf32>
    %128 = arith.negf %127 : vector<8x32xf32>
    %129 = math.exp %128 : vector<8x32xf32>
    %cst_43 = arith.constant 1.000000e+00 : f32
    %130 = vector.broadcast %cst_43 : f32 to vector<8x32xf32>
    %131 = arith.addf %130, %129 : vector<8x32xf32>
    %132 = arith.divf %130, %131 : vector<8x32xf32>
    %133 = vector.extract_strided_slice %117 {offsets = [0, 64], sizes = [8, 32], strides = [1, 1]} : vector<8x128xf32> to vector<8x32xf32>
    %134 = vector.extract_strided_slice %119 {offsets = [0, 64], sizes = [8, 32], strides = [1, 1]} : vector<8x128xf32> to vector<8x32xf32>
    %135 = arith.addf %134, %30 : vector<8x32xf32>
    %136 = arith.mulf %126, %135 : vector<8x32xf32>
    %137 = arith.addf %133, %136 : vector<8x32xf32>
    %138 = math.tanh %137 : vector<8x32xf32>
    %cst_44 = arith.constant 1.000000e+00 : f32
    %139 = vector.broadcast %cst_44 : f32 to vector<8x32xf32>
    %140 = arith.subf %139, %132 : vector<8x32xf32>
    %141 = arith.mulf %140, %138 : vector<8x32xf32>
    %142 = arith.mulf %132, %115 : vector<8x32xf32>
    %143 = arith.addf %141, %142 : vector<8x32xf32>
    %c24_45 = arith.constant 24 : index
    %c0_46 = arith.constant 0 : index
    %144 = vector.load %arg13[%c24_45, %c0_46] : memref<64x32xf32, #tpu.memory_space<vmem>>, vector<8x32xf32>
    tpu.vector_store %arg13[%c24_45, %c0_46], %143 {strides = array<i32>} : memref<64x32xf32, #tpu.memory_space<vmem>>, vector<8x32xf32>,
    %c32 = arith.constant 32 : index
    %c0_47 = arith.constant 0 : index
    %145 = vector.load %arg12[%c32, %c0_47] : memref<64x128xf32, #tpu.memory_space<vmem>>, vector<8x128xf32>
    %146 = arith.truncf %143 : vector<8x32xf32> to vector<8x32xbf16>
    %cst_48 = arith.constant dense<0.000000e+00> : vector<8x128xf32>
    %147 = tpu.matmul %146, %31, %cst_48 {dimension_numbers = #tpu.dot_dimension_numbers<[1], [0], [0], [1], [0, 0, 1, 1], [], []>} : vector<8x32xbf16>, vector<32x128xbf16>, vector<8x128xf32> -> vector<8x128xf32>
    %148 = arith.addf %145, %147 : vector<8x128xf32>
    %149 = vector.extract_strided_slice %148 {offsets = [0, 0], sizes = [8, 32], strides = [1, 1]} : vector<8x128xf32> to vector<8x32xf32>
    %150 = arith.negf %149 : vector<8x32xf32>
    %151 = math.exp %150 : vector<8x32xf32>
    %cst_49 = arith.constant 1.000000e+00 : f32
    %152 = vector.broadcast %cst_49 : f32 to vector<8x32xf32>
    %153 = arith.addf %152, %151 : vector<8x32xf32>
    %154 = arith.divf %152, %153 : vector<8x32xf32>
    %155 = vector.extract_strided_slice %148 {offsets = [0, 32], sizes = [8, 32], strides = [1, 1]} : vector<8x128xf32> to vector<8x32xf32>
    %156 = arith.negf %155 : vector<8x32xf32>
    %157 = math.exp %156 : vector<8x32xf32>
    %cst_50 = arith.constant 1.000000e+00 : f32
    %158 = vector.broadcast %cst_50 : f32 to vector<8x32xf32>
    %159 = arith.addf %158, %157 : vector<8x32xf32>
    %160 = arith.divf %158, %159 : vector<8x32xf32>
    %161 = vector.extract_strided_slice %145 {offsets = [0, 64], sizes = [8, 32], strides = [1, 1]} : vector<8x128xf32> to vector<8x32xf32>
    %162 = vector.extract_strided_slice %147 {offsets = [0, 64], sizes = [8, 32], strides = [1, 1]} : vector<8x128xf32> to vector<8x32xf32>
    %163 = arith.addf %162, %30 : vector<8x32xf32>
    %164 = arith.mulf %154, %163 : vector<8x32xf32>
    %165 = arith.addf %161, %164 : vector<8x32xf32>
    %166 = math.tanh %165 : vector<8x32xf32>
    %cst_51 = arith.constant 1.000000e+00 : f32
    %167 = vector.broadcast %cst_51 : f32 to vector<8x32xf32>
    %168 = arith.subf %167, %160 : vector<8x32xf32>
    %169 = arith.mulf %168, %166 : vector<8x32xf32>
    %170 = arith.mulf %160, %143 : vector<8x32xf32>
    %171 = arith.addf %169, %170 : vector<8x32xf32>
    %c32_52 = arith.constant 32 : index
    %c0_53 = arith.constant 0 : index
    %172 = vector.load %arg13[%c32_52, %c0_53] : memref<64x32xf32, #tpu.memory_space<vmem>>, vector<8x32xf32>
    tpu.vector_store %arg13[%c32_52, %c0_53], %171 {strides = array<i32>} : memref<64x32xf32, #tpu.memory_space<vmem>>, vector<8x32xf32>,
    %c40 = arith.constant 40 : index
    %c0_54 = arith.constant 0 : index
    %173 = vector.load %arg12[%c40, %c0_54] : memref<64x128xf32, #tpu.memory_space<vmem>>, vector<8x128xf32>
    %174 = arith.truncf %171 : vector<8x32xf32> to vector<8x32xbf16>
    %cst_55 = arith.constant dense<0.000000e+00> : vector<8x128xf32>
    %175 = tpu.matmul %174, %31, %cst_55 {dimension_numbers = #tpu.dot_dimension_numbers<[1], [0], [0], [1], [0, 0, 1, 1], [], []>} : vector<8x32xbf16>, vector<32x128xbf16>, vector<8x128xf32> -> vector<8x128xf32>
    %176 = arith.addf %173, %175 : vector<8x128xf32>
    %177 = vector.extract_strided_slice %176 {offsets = [0, 0], sizes = [8, 32], strides = [1, 1]} : vector<8x128xf32> to vector<8x32xf32>
    %178 = arith.negf %177 : vector<8x32xf32>
    %179 = math.exp %178 : vector<8x32xf32>
    %cst_56 = arith.constant 1.000000e+00 : f32
    %180 = vector.broadcast %cst_56 : f32 to vector<8x32xf32>
    %181 = arith.addf %180, %179 : vector<8x32xf32>
    %182 = arith.divf %180, %181 : vector<8x32xf32>
    %183 = vector.extract_strided_slice %176 {offsets = [0, 32], sizes = [8, 32], strides = [1, 1]} : vector<8x128xf32> to vector<8x32xf32>
    %184 = arith.negf %183 : vector<8x32xf32>
    %185 = math.exp %184 : vector<8x32xf32>
    %cst_57 = arith.constant 1.000000e+00 : f32
    %186 = vector.broadcast %cst_57 : f32 to vector<8x32xf32>
    %187 = arith.addf %186, %185 : vector<8x32xf32>
    %188 = arith.divf %186, %187 : vector<8x32xf32>
    %189 = vector.extract_strided_slice %173 {offsets = [0, 64], sizes = [8, 32], strides = [1, 1]} : vector<8x128xf32> to vector<8x32xf32>
    %190 = vector.extract_strided_slice %175 {offsets = [0, 64], sizes = [8, 32], strides = [1, 1]} : vector<8x128xf32> to vector<8x32xf32>
    %191 = arith.addf %190, %30 : vector<8x32xf32>
    %192 = arith.mulf %182, %191 : vector<8x32xf32>
    %193 = arith.addf %189, %192 : vector<8x32xf32>
    %194 = math.tanh %193 : vector<8x32xf32>
    %cst_58 = arith.constant 1.000000e+00 : f32
    %195 = vector.broadcast %cst_58 : f32 to vector<8x32xf32>
    %196 = arith.subf %195, %188 : vector<8x32xf32>
    %197 = arith.mulf %196, %194 : vector<8x32xf32>
    %198 = arith.mulf %188, %171 : vector<8x32xf32>
    %199 = arith.addf %197, %198 : vector<8x32xf32>
    %c40_59 = arith.constant 40 : index
    %c0_60 = arith.constant 0 : index
    %200 = vector.load %arg13[%c40_59, %c0_60] : memref<64x32xf32, #tpu.memory_space<vmem>>, vector<8x32xf32>
    tpu.vector_store %arg13[%c40_59, %c0_60], %199 {strides = array<i32>} : memref<64x32xf32, #tpu.memory_space<vmem>>, vector<8x32xf32>,
    %c48 = arith.constant 48 : index
    %c0_61 = arith.constant 0 : index
    %201 = vector.load %arg12[%c48, %c0_61] : memref<64x128xf32, #tpu.memory_space<vmem>>, vector<8x128xf32>
    %202 = arith.truncf %199 : vector<8x32xf32> to vector<8x32xbf16>
    %cst_62 = arith.constant dense<0.000000e+00> : vector<8x128xf32>
    %203 = tpu.matmul %202, %31, %cst_62 {dimension_numbers = #tpu.dot_dimension_numbers<[1], [0], [0], [1], [0, 0, 1, 1], [], []>} : vector<8x32xbf16>, vector<32x128xbf16>, vector<8x128xf32> -> vector<8x128xf32>
    %204 = arith.addf %201, %203 : vector<8x128xf32>
    %205 = vector.extract_strided_slice %204 {offsets = [0, 0], sizes = [8, 32], strides = [1, 1]} : vector<8x128xf32> to vector<8x32xf32>
    %206 = arith.negf %205 : vector<8x32xf32>
    %207 = math.exp %206 : vector<8x32xf32>
    %cst_63 = arith.constant 1.000000e+00 : f32
    %208 = vector.broadcast %cst_63 : f32 to vector<8x32xf32>
    %209 = arith.addf %208, %207 : vector<8x32xf32>
    %210 = arith.divf %208, %209 : vector<8x32xf32>
    %211 = vector.extract_strided_slice %204 {offsets = [0, 32], sizes = [8, 32], strides = [1, 1]} : vector<8x128xf32> to vector<8x32xf32>
    %212 = arith.negf %211 : vector<8x32xf32>
    %213 = math.exp %212 : vector<8x32xf32>
    %cst_64 = arith.constant 1.000000e+00 : f32
    %214 = vector.broadcast %cst_64 : f32 to vector<8x32xf32>
    %215 = arith.addf %214, %213 : vector<8x32xf32>
    %216 = arith.divf %214, %215 : vector<8x32xf32>
    %217 = vector.extract_strided_slice %201 {offsets = [0, 64], sizes = [8, 32], strides = [1, 1]} : vector<8x128xf32> to vector<8x32xf32>
    %218 = vector.extract_strided_slice %203 {offsets = [0, 64], sizes = [8, 32], strides = [1, 1]} : vector<8x128xf32> to vector<8x32xf32>
    %219 = arith.addf %218, %30 : vector<8x32xf32>
    %220 = arith.mulf %210, %219 : vector<8x32xf32>
    %221 = arith.addf %217, %220 : vector<8x32xf32>
    %222 = math.tanh %221 : vector<8x32xf32>
    %cst_65 = arith.constant 1.000000e+00 : f32
    %223 = vector.broadcast %cst_65 : f32 to vector<8x32xf32>
    %224 = arith.subf %223, %216 : vector<8x32xf32>
    %225 = arith.mulf %224, %222 : vector<8x32xf32>
    %226 = arith.mulf %216, %199 : vector<8x32xf32>
    %227 = arith.addf %225, %226 : vector<8x32xf32>
    %c48_66 = arith.constant 48 : index
    %c0_67 = arith.constant 0 : index
    %228 = vector.load %arg13[%c48_66, %c0_67] : memref<64x32xf32, #tpu.memory_space<vmem>>, vector<8x32xf32>
    tpu.vector_store %arg13[%c48_66, %c0_67], %227 {strides = array<i32>} : memref<64x32xf32, #tpu.memory_space<vmem>>, vector<8x32xf32>,
    %c56 = arith.constant 56 : index
    %c0_68 = arith.constant 0 : index
    %229 = vector.load %arg12[%c56, %c0_68] : memref<64x128xf32, #tpu.memory_space<vmem>>, vector<8x128xf32>
    %230 = arith.truncf %227 : vector<8x32xf32> to vector<8x32xbf16>
    %cst_69 = arith.constant dense<0.000000e+00> : vector<8x128xf32>
    %231 = tpu.matmul %230, %31, %cst_69 {dimension_numbers = #tpu.dot_dimension_numbers<[1], [0], [0], [1], [0, 0, 1, 1], [], []>} : vector<8x32xbf16>, vector<32x128xbf16>, vector<8x128xf32> -> vector<8x128xf32>
    %232 = arith.addf %229, %231 : vector<8x128xf32>
    %233 = vector.extract_strided_slice %232 {offsets = [0, 0], sizes = [8, 32], strides = [1, 1]} : vector<8x128xf32> to vector<8x32xf32>
    %234 = arith.negf %233 : vector<8x32xf32>
    %235 = math.exp %234 : vector<8x32xf32>
    %cst_70 = arith.constant 1.000000e+00 : f32
    %236 = vector.broadcast %cst_70 : f32 to vector<8x32xf32>
    %237 = arith.addf %236, %235 : vector<8x32xf32>
    %238 = arith.divf %236, %237 : vector<8x32xf32>
    %239 = vector.extract_strided_slice %232 {offsets = [0, 32], sizes = [8, 32], strides = [1, 1]} : vector<8x128xf32> to vector<8x32xf32>
    %240 = arith.negf %239 : vector<8x32xf32>
    %241 = math.exp %240 : vector<8x32xf32>
    %cst_71 = arith.constant 1.000000e+00 : f32
    %242 = vector.broadcast %cst_71 : f32 to vector<8x32xf32>
    %243 = arith.addf %242, %241 : vector<8x32xf32>
    %244 = arith.divf %242, %243 : vector<8x32xf32>
    %245 = vector.extract_strided_slice %229 {offsets = [0, 64], sizes = [8, 32], strides = [1, 1]} : vector<8x128xf32> to vector<8x32xf32>
    %246 = vector.extract_strided_slice %231 {offsets = [0, 64], sizes = [8, 32], strides = [1, 1]} : vector<8x128xf32> to vector<8x32xf32>
    %247 = arith.addf %246, %30 : vector<8x32xf32>
    %248 = arith.mulf %238, %247 : vector<8x32xf32>
    %249 = arith.addf %245, %248 : vector<8x32xf32>
    %250 = math.tanh %249 : vector<8x32xf32>
    %cst_72 = arith.constant 1.000000e+00 : f32
    %251 = vector.broadcast %cst_72 : f32 to vector<8x32xf32>
    %252 = arith.subf %251, %244 : vector<8x32xf32>
    %253 = arith.mulf %252, %250 : vector<8x32xf32>
    %254 = arith.mulf %244, %227 : vector<8x32xf32>
    %255 = arith.addf %253, %254 : vector<8x32xf32>
    %c56_73 = arith.constant 56 : index
    %c0_74 = arith.constant 0 : index
    %256 = vector.load %arg13[%c56_73, %c0_74] : memref<64x32xf32, #tpu.memory_space<vmem>>, vector<8x32xf32>
    tpu.vector_store %arg13[%c56_73, %c0_74], %255 {strides = array<i32>} : memref<64x32xf32, #tpu.memory_space<vmem>>, vector<8x32xf32>,
    %c0_75 = arith.constant 0 : index
    %c0_76 = arith.constant 0 : index
    %257 = vector.load %arg13[%c0_75, %c0_76] : memref<64x32xf32, #tpu.memory_space<vmem>>, vector<64x32xf32>
    %258 = arith.truncf %257 : vector<64x32xf32> to vector<64x32xbf16>
    %c0_77 = arith.constant 0 : index
    %c0_78 = arith.constant 0 : index
    %259 = vector.load %arg7[%c0_77, %c0_78] : memref<32x128xbf16, #tpu.memory_space<vmem>>, vector<32x128xbf16>
    %cst_79 = arith.constant dense<0.000000e+00> : vector<64x128xf32>
    %260 = tpu.matmul %258, %259, %cst_79 {dimension_numbers = #tpu.dot_dimension_numbers<[1], [0], [0], [1], [0, 0, 1, 1], [], []>} : vector<64x32xbf16>, vector<32x128xbf16>, vector<64x128xf32> -> vector<64x128xf32>
    %c0_80 = arith.constant 0 : index
    %c0_81 = arith.constant 0 : index
    %261 = vector.load %arg8[%c0_80, %c0_81] : memref<1x128xf32, #tpu.memory_space<vmem>>, vector<1x128xf32>
    %262 = vector.broadcast %261 : vector<1x128xf32> to vector<64x128xf32>
    %263 = arith.addf %260, %262 : vector<64x128xf32>
    %cst_82 = arith.constant 0.000000e+00 : f32
    %264 = vector.broadcast %cst_82 : f32 to vector<64x128xf32>
    %265 = arith.maximumf %263, %264 : vector<64x128xf32>
    %266 = arith.truncf %265 : vector<64x128xf32> to vector<64x128xbf16>
    %c0_83 = arith.constant 0 : index
    %c0_84 = arith.constant 0 : index
    %267 = vector.load %arg9[%c0_83, %c0_84] : memref<128x128xbf16, #tpu.memory_space<vmem>>, vector<128x128xbf16>
    %cst_85 = arith.constant dense<0.000000e+00> : vector<64x128xf32>
    %268 = tpu.matmul %266, %267, %cst_85 {dimension_numbers = #tpu.dot_dimension_numbers<[1], [0], [0], [1], [0, 0, 1, 1], [], []>} : vector<64x128xbf16>, vector<128x128xbf16>, vector<64x128xf32> -> vector<64x128xf32>
    %c0_86 = arith.constant 0 : index
    %c0_87 = arith.constant 0 : index
    %269 = vector.load %arg10[%c0_86, %c0_87] : memref<1x128xf32, #tpu.memory_space<vmem>>, vector<1x128xf32>
    %270 = vector.broadcast %269 : vector<1x128xf32> to vector<64x128xf32>
    %271 = arith.addf %268, %270 : vector<64x128xf32>
    %c0_88 = arith.constant 0 : index
    %c0_89 = arith.constant 0 : index
    %272 = vector.load %arg11[%c0_88, %c0_89] : memref<64x128xf32, #tpu.memory_space<vmem>>, vector<64x128xf32>
    tpu.vector_store %arg11[%c0_88, %c0_89], %271 {strides = array<i32>} : memref<64x128xf32, #tpu.memory_space<vmem>>, vector<64x128xf32>,
    return
  }
}

</mosaic_0001>

<llo_original>
// kernel: rnn4rl_forward.1
$region0: #{rnn4rl_forward.1}
  #allocation0 [shape = 'u32[]', space=smem, size = 0x4, offset = 0x4, fixed_abs, tag = 'smem constant byte address 0x4 - core index']
  #allocation1 [shape = 'u32[144,128]{1,0:T(1,128)}', space=vmem, size = 0x12000, scoped, tag = 'internal scratch']
  #allocation2 [shape = 'f32[64,128]{1,0:T(8,128)}', space=vmem, size = 0x8000, scoped, tag = 'scratch operand']
  #allocation3 [shape = 'f32[64,32]{1,0:T(8,128)}', space=vmem, size = 0x8000, scoped, tag = 'scratch operand']
  %s0 = inlined_call_operand.vmem [shape: s32[64,2], index: 0, kind: input, shape index: {}]
  %s1 = inlined_call_operand.vmem [shape: f32[64,1], index: 1, kind: input, shape index: {}]
  %s2 = inlined_call_operand.vmem [shape: f32[2,32], index: 2, kind: input, shape index: {}]
  %s3 = inlined_call_operand.vmem [shape: bf16[32,128], index: 3, kind: input, shape index: {}]
  %s4 = inlined_call_operand.vmem [shape: bf16[32,128], index: 4, kind: input, shape index: {}]
  %s5 = inlined_call_operand.vmem [shape: bf16[32,128], index: 5, kind: input, shape index: {}]
  %s6 = inlined_call_operand.vmem [shape: f32[1,32], index: 6, kind: input, shape index: {}]
  %s7 = inlined_call_operand.vmem [shape: bf16[32,128], index: 7, kind: input, shape index: {}]
  %s8 = inlined_call_operand.vmem [shape: f32[1,128], index: 8, kind: input, shape index: {}]
  %s9 = inlined_call_operand.vmem [shape: bf16[128,128], index: 9, kind: input, shape index: {}]
  %s10 = inlined_call_operand.vmem [shape: f32[1,128], index: 10, kind: input, shape index: {}]
  %s11 = inlined_call_operand.vmem [shape: f32[64,128], index: 11, kind: output, shape index: {}]
  %s12 = sld [smem:[#allocation0]]
  $region54: #{rnn4rl_forward.1} parent=0
    _
  %s14 = ssub.s32 1, %s12
  %s15 = scalar_select 0, %s14, %s12
  // Predicated region
  $region2: #{rnn4rl_forward.1} parent=0 // pred_check
    _
  $region3: #{rnn4rl_forward.1} parent=0 // pred_check_branch
    %17 = sbr.rel (0) target = $region5
  $region4: #{rnn4rl_forward.1} parent=0 // pred_region
    _
  $region5: #{rnn4rl_forward.1} parent=0 // pred_fallthru
    _
  // Predicated region
  $region6: #{rnn4rl_forward.1} parent=0 // pred_check
    _
  $region7: #{rnn4rl_forward.1} parent=0 // pred_check_branch
    %19 = sbr.rel (0) target = $region9
  $region8: #{rnn4rl_forward.1} parent=0 // pred_region
    _
  $region9: #{rnn4rl_forward.1} parent=0 // pred_fallthru
    _
  // Predicated region
  $region10: #{rnn4rl_forward.1} parent=0 // pred_check
    _
  $region11: #{rnn4rl_forward.1} parent=0 // pred_check_branch
    %21 = sbr.rel (0) target = $region13
  $region12: #{rnn4rl_forward.1} parent=0 // pred_region
    _
  $region13: #{rnn4rl_forward.1} parent=0 // pred_fallthru
    _
  // Predicated region
  $region14: #{rnn4rl_forward.1} parent=0 // pred_check
    _
  $region15: #{rnn4rl_forward.1} parent=0 // pred_check_branch
    %23 = sbr.rel (0) target = $region17
  $region16: #{rnn4rl_forward.1} parent=0 // pred_region
    _
  $region17: #{rnn4rl_forward.1} parent=0 // pred_fallthru
    _
  // Predicated region
  $region18: #{rnn4rl_forward.1} parent=0 // pred_check
    _
  $region19: #{rnn4rl_forward.1} parent=0 // pred_check_branch
    %25 = sbr.rel (0) target = $region21
  $region20: #{rnn4rl_forward.1} parent=0 // pred_region
    _
  $region21: #{rnn4rl_forward.1} parent=0 // pred_fallthru
    _
  // Predicated region
  $region22: #{rnn4rl_forward.1} parent=0 // pred_check
    _
  $region23: #{rnn4rl_forward.1} parent=0 // pred_check_branch
    %27 = sbr.rel (0) target = $region25
  $region24: #{rnn4rl_forward.1} parent=0 // pred_region
    _
  $region25: #{rnn4rl_forward.1} parent=0 // pred_fallthru
    _
  // Predicated region
  $region26: #{rnn4rl_forward.1} parent=0 // pred_check
    _
  $region27: #{rnn4rl_forward.1} parent=0 // pred_check_branch
    %29 = sbr.rel (0) target = $region29
  $region28: #{rnn4rl_forward.1} parent=0 // pred_region
    _
  $region29: #{rnn4rl_forward.1} parent=0 // pred_fallthru
    _
  // Predicated region
  $region30: #{rnn4rl_forward.1} parent=0 // pred_check
    _
  $region31: #{rnn4rl_forward.1} parent=0 // pred_check_branch
    %31 = sbr.rel (0) target = $region33
  $region32: #{rnn4rl_forward.1} parent=0 // pred_region
    _
  $region33: #{rnn4rl_forward.1} parent=0 // pred_fallthru
    _
  // Predicated region
  $region34: #{rnn4rl_forward.1} parent=0 // pred_check
    _
  $region35: #{rnn4rl_forward.1} parent=0 // pred_check_branch
    %33 = sbr.rel (0) target = $region37
  $region36: #{rnn4rl_forward.1} parent=0 // pred_region
    _
  $region37: #{rnn4rl_forward.1} parent=0 // pred_fallthru
    _
  // Predicated region
  $region38: #{rnn4rl_forward.1} parent=0 // pred_check
    _
  $region39: #{rnn4rl_forward.1} parent=0 // pred_check_branch
    %35 = sbr.rel (0) target = $region41
  $region40: #{rnn4rl_forward.1} parent=0 // pred_region
    _
  $region41: #{rnn4rl_forward.1} parent=0 // pred_fallthru
    _
  // Predicated region
  $region42: #{rnn4rl_forward.1} parent=0 // pred_check
    _
  $region43: #{rnn4rl_forward.1} parent=0 // pred_check_branch
    %37 = sbr.rel (0) target = $region45
  $region44: #{rnn4rl_forward.1} parent=0 // pred_region
    _
  $region45: #{rnn4rl_forward.1} parent=0 // pred_fallthru
    _
  %v39 = vld [vmem:[%s0] sm:$0xff]
  %v40 = vld [vmem:[%s0 + $0x8] sm:$0xff]
  %v41 = vld [vmem:[%s0 + $0x10] sm:$0xff]
  %v42 = vld [vmem:[%s0 + $0x18] sm:$0xff]
  %v43 = vld [vmem:[%s0 + $0x20] sm:$0xff]
  %v44 = vld [vmem:[%s0 + $0x28] sm:$0xff]
  %v45 = vld [vmem:[%s0 + $0x30] sm:$0xff]
  %v46 = vld [vmem:[%s0 + $0x38] sm:$0xff]
  %v47 = vlaneseq
  %v48 = vand.u32 %v47, 127
  %49 = vset.pattern.permute.xlu0 0
  %50 = vperm.xlu0 %49, %v39
  %v51 = vpop.permute.xlu0 %50
  %52 = vset.pattern.permute.xlu0 0
  %53 = vperm.xlu0 %52, %v40
  %v54 = vpop.permute.xlu0 %53
  %55 = vset.pattern.permute.xlu0 0
  %56 = vperm.xlu0 %55, %v41
  %v57 = vpop.permute.xlu0 %56
  %58 = vset.pattern.permute.xlu0 0
  %59 = vperm.xlu0 %58, %v42
  %v60 = vpop.permute.xlu0 %59
  %61 = vset.pattern.permute.xlu0 0
  %62 = vperm.xlu0 %61, %v43
  %v63 = vpop.permute.xlu0 %62
  %64 = vset.pattern.permute.xlu0 0
  %65 = vperm.xlu0 %64, %v44
  %v66 = vpop.permute.xlu0 %65
  %67 = vset.pattern.permute.xlu0 0
  %68 = vperm.xlu0 %67, %v45
  %v69 = vpop.permute.xlu0 %68
  %70 = vset.pattern.permute.xlu0 0
  %71 = vperm.xlu0 %70, %v46
  %v72 = vpop.permute.xlu0 %71
  %vm73 = vcmp.eq.s32.totalorder %v48, %v51
  %vm74 = vcmp.eq.s32.totalorder %v48, %v54
  %vm75 = vcmp.eq.s32.totalorder %v48, %v57
  %vm76 = vcmp.eq.s32.totalorder %v48, %v60
  %vm77 = vcmp.eq.s32.totalorder %v48, %v63
  %vm78 = vcmp.eq.s32.totalorder %v48, %v66
  %vm79 = vcmp.eq.s32.totalorder %v48, %v69
  %vm80 = vcmp.eq.s32.totalorder %v48, %v72
  %81 = vset.pattern.permute.xlu0 1
  %82 = vperm.xlu0 %81, %v39
  %v83 = vpop.permute.xlu0 %82
  %84 = vset.pattern.permute.xlu0 1
  %85 = vperm.xlu0 %84, %v40
  %v86 = vpop.permute.xlu0 %85
  %87 = vset.pattern.permute.xlu0 1
  %88 = vperm.xlu0 %87, %v41
  %v89 = vpop.permute.xlu0 %88
  %90 = vset.pattern.permute.xlu0 1
  %91 = vperm.xlu0 %90, %v42
  %v92 = vpop.permute.xlu0 %91
  %93 = vset.pattern.permute.xlu0 1
  %94 = vperm.xlu0 %93, %v43
  %v95 = vpop.permute.xlu0 %94
  %96 = vset.pattern.permute.xlu0 1
  %97 = vperm.xlu0 %96, %v44
  %v98 = vpop.permute.xlu0 %97
  %99 = vset.pattern.permute.xlu0 1
  %100 = vperm.xlu0 %99, %v45
  %v101 = vpop.permute.xlu0 %100
  %102 = vset.pattern.permute.xlu0 1
  %103 = vperm.xlu0 %102, %v46
  %v104 = vpop.permute.xlu0 %103
  %vm105 = vcmp.eq.s32.totalorder %v48, %v83
  %vm106 = vcmp.eq.s32.totalorder %v48, %v86
  %vm107 = vcmp.eq.s32.totalorder %v48, %v89
  %vm108 = vcmp.eq.s32.totalorder %v48, %v92
  %vm109 = vcmp.eq.s32.totalorder %v48, %v95
  %vm110 = vcmp.eq.s32.totalorder %v48, %v98
  %vm111 = vcmp.eq.s32.totalorder %v48, %v101
  %vm112 = vcmp.eq.s32.totalorder %v48, %v104
  %vm113 = vmor %vm73, %vm105
  %vm114 = vmor %vm74, %vm106
  %vm115 = vmor %vm75, %vm107
  %vm116 = vmor %vm76, %vm108
  %vm117 = vmor %vm77, %vm109
  %vm118 = vmor %vm78, %vm110
  %vm119 = vmor %vm79, %vm111
  %vm120 = vmor %vm80, %vm112
  %v121 = vsel %vm113, 1, 0
  %v122 = vsel %vm114, 1, 0
  %v123 = vsel %vm115, 1, 0
  %v124 = vsel %vm116, 1, 0
  %v125 = vsel %vm117, 1, 0
  %v126 = vsel %vm118, 1, 0
  %v127 = vsel %vm119, 1, 0
  %v128 = vsel %vm120, 1, 0
  %v129 = vcvt.s32.f32 %v121
  %v130 = vcvt.s32.f32 %v122
  %v131 = vcvt.s32.f32 %v123
  %v132 = vcvt.s32.f32 %v124
  %v133 = vcvt.s32.f32 %v125
  %v134 = vcvt.s32.f32 %v126
  %v135 = vcvt.s32.f32 %v127
  %v136 = vcvt.s32.f32 %v128
  %v137 = vpack.c.bf16 %v130, %v129
  %v138 = vpack.c.bf16 %v132, %v131
  %v139 = vpack.c.bf16 %v134, %v133
  %v140 = vpack.c.bf16 %v136, %v135
  %v141 = vld [vmem:[%s2] sm:$0x1]
  %v142 = vld [vmem:[%s2 + $0x1] sm:$0x1]
  %v143 = vld [vmem:[%s1] sm:$0xff]
  %v144 = vld [vmem:[%s1 + $0x8] sm:$0xff]
  %v145 = vld [vmem:[%s1 + $0x10] sm:$0xff]
  %v146 = vld [vmem:[%s1 + $0x18] sm:$0xff]
  %v147 = vld [vmem:[%s1 + $0x20] sm:$0xff]
  %v148 = vld [vmem:[%s1 + $0x28] sm:$0xff]
  %v149 = vld [vmem:[%s1 + $0x30] sm:$0xff]
  %v150 = vld [vmem:[%s1 + $0x38] sm:$0xff]
  %152 = vset.pattern.permute.xlu0 0
  %153 = vperm.xlu0 %152, %v143
  %v154 = vpop.permute.xlu0 %153
  %157 = vset.pattern.permute.xlu0 0
  %158 = vperm.xlu0 %157, %v144
  %v159 = vpop.permute.xlu0 %158
  %162 = vset.pattern.permute.xlu0 0
  %163 = vperm.xlu0 %162, %v145
  %v164 = vpop.permute.xlu0 %163
  %167 = vset.pattern.permute.xlu0 0
  %168 = vperm.xlu0 %167, %v146
  %v169 = vpop.permute.xlu0 %168
  %172 = vset.pattern.permute.xlu0 0
  %173 = vperm.xlu0 %172, %v147
  %v174 = vpop.permute.xlu0 %173
  %177 = vset.pattern.permute.xlu0 0
  %178 = vperm.xlu0 %177, %v148
  %v179 = vpop.permute.xlu0 %178
  %182 = vset.pattern.permute.xlu0 0
  %183 = vperm.xlu0 %182, %v149
  %v184 = vpop.permute.xlu0 %183
  %187 = vset.pattern.permute.xlu0 0
  %188 = vperm.xlu0 %187, %v150
  %v189 = vpop.permute.xlu0 %188
  %v191 = vlaneseq
  %v192 = vshrl.u32 %v191, 7
  %v193 = vsub.s32 0, %v192
  %v194 = vrot.slane %v141, %v193
  %v195 = vmul.f32 %v154, %v194
  %v196 = vmul.f32 %v159, %v194
  %v197 = vmul.f32 %v164, %v194
  %v198 = vmul.f32 %v169, %v194
  %v199 = vmul.f32 %v174, %v194
  %v200 = vmul.f32 %v179, %v194
  %v201 = vmul.f32 %v184, %v194
  %v202 = vmul.f32 %v189, %v194
  %v203 = vlaneseq
  %v204 = vshrl.u32 %v203, 7
  %v205 = vsub.s32 0, %v204
  %v206 = vrot.slane %v142, %v205
  %v207 = vadd.f32 %v195, %v206
  %v208 = vadd.f32 %v196, %v206
  %v209 = vadd.f32 %v197, %v206
  %v210 = vadd.f32 %v198, %v206
  %v211 = vadd.f32 %v199, %v206
  %v212 = vadd.f32 %v200, %v206
  %v213 = vadd.f32 %v201, %v206
  %v214 = vadd.f32 %v202, %v206
  %v215 = vtanh.pop %v207
  %v216 = vtanh.pop %v208
  %v217 = vtanh.pop %v209
  %v218 = vtanh.pop %v210
  %v219 = vtanh.pop %v211
  %v220 = vtanh.pop %v212
  %v221 = vtanh.pop %v213
  %v222 = vtanh.pop %v214
  %v223 = vld [vmem:[%s3] sm:$0xf]
  %v224 = vld [vmem:[%s3 + $0x4] sm:$0xf]
  %v225 = vld [vmem:[%s3 + $0x8] sm:$0xf]
  %v226 = vld [vmem:[%s3 + $0xc] sm:$0xf]
  %v227 = vpack.c.bf16 %v216, %v215
  %v228 = vpack.c.bf16 %v218, %v217
  %v229 = vpack.c.bf16 %v220, %v219
  %v230 = vpack.c.bf16 %v222, %v221
  %v231 = vld [vmem:[%s4] sm:$0xf]
  %v232 = vld [vmem:[%s4 + $0x4] sm:$0xf]
  %v233 = vld [vmem:[%s4 + $0x8] sm:$0xf]
  %v234 = vld [vmem:[%s4 + $0xc] sm:$0xf]
  %v239 = vunpack.c.l.b16 %v231
  %v240 = vunpack.c.l.b16 %v232
  %v241 = vunpack.c.l.b16 %v233
  %v242 = vunpack.c.l.b16 %v234
  %v243 = vpack.c.b16 %v240, %v239
  %v244 = vpack.c.b16 %v242, %v241
  %vm247 = vcmask 261120
  %v249 = vsel %vm247, %v227, 0
  %v252 = vsel %vm247, %v228, 0
  %v255 = vsel %vm247, %v229, 0
  %v258 = vsel %vm247, %v230, 0
  %260 = vmatprep.subr.bf16.mxu0 0
  %261 = vmatpush1.bf16.msra.mxu0 0
  %262 = vmatprep.subr.bf16.mxu0 0
  %263 = vmatpush1.bf16.msra.mxu0 0
  %264 = vmatprep.subr.bf16.mxu0 0
  %265 = vmatpush1.bf16.msra.mxu0 0
  %266 = vmatprep.subr.bf16.mxu0 0
  %267 = vmatpush1.bf16.msra.mxu0 0
  %268 = vmatprep.subr.bf16.mxu0 0
  %269 = vmatpush1.bf16.msra.mxu0 0
  %270 = vmatprep.subr.bf16.mxu0 0
  %271 = vmatpush1.bf16.msra.mxu0 0
  %272 = vmatprep.subr.bf16.mxu0 0
  %273 = vmatpush1.bf16.msra.mxu0 %v244
  %274 = vmatprep.subr.bf16.mxu0 0
  %275 = vmatpush1.bf16.msra.mxu0 %v243
  %276 = vmatprep.subr.bf16.mxu0 0
  %277 = vmatpush2.bf16.msra.mxu0 0
  %278 = vmatprep.subr.bf16.mxu0 0
  %279 = vmatpush2.bf16.msra.mxu0 0
  %280 = vmatprep.subr.bf16.mxu0 0
  %281 = vmatpush2.bf16.msra.mxu0 0
  %282 = vmatprep.subr.bf16.mxu0 0
  %283 = vmatpush2.bf16.msra.mxu0 0
  %284 = vmatprep.subr.bf16.mxu0 0
  %285 = vmatpush2.bf16.msra.mxu0 0
  %286 = vmatprep.subr.bf16.mxu0 0
  %287 = vmatpush2.bf16.msra.mxu0 0
  %288 = vmatprep.subr.bf16.mxu0 0
  %289 = vmatpush2.bf16.msra.mxu0 0
  %290 = vmatprep.subr.bf16.mxu0 0
  %291 = vmatpush2.bf16.msra.mxu0 0
  %292 = vmatprep.mubr.bf16.mxu0 0
  %293 = vmatmul.mubr.bf16.gmra.mxu0 %v249
  %v294 = vpop.f32.mrf.mxu0
  %v295 = vadd.f32 0.0, %v294
  %v296 = vpop.f32.mrf.mxu0
  %v297 = vpop.f32.mrf.mxu0
  %v298 = vadd.f32 0.0, %v297
  %v299 = vpop.f32.mrf.mxu0
  %300 = vmatprep.mubr.bf16.mxu0 0
  %301 = vmatmul.mubr.bf16.gmra.mxu0 %v252
  %v302 = vpop.f32.mrf.mxu0
  %v303 = vadd.f32 0.0, %v302
  %v304 = vpop.f32.mrf.mxu0
  %v305 = vpop.f32.mrf.mxu0
  %v306 = vadd.f32 0.0, %v305
  %v307 = vpop.f32.mrf.mxu0
  %308 = vmatprep.mubr.bf16.mxu0 0
  %309 = vmatmul.mubr.bf16.gmra.mxu0 %v255
  %v310 = vpop.f32.mrf.mxu0
  %v311 = vadd.f32 0.0, %v310
  %v312 = vpop.f32.mrf.mxu0
  %v313 = vpop.f32.mrf.mxu0
  %v314 = vadd.f32 0.0, %v313
  %v315 = vpop.f32.mrf.mxu0
  %316 = vmatprep.mubr.bf16.mxu0 0
  %317 = vmatmul.mubr.bf16.gmra.mxu0 %v258
  %v318 = vpop.f32.mrf.mxu0
  %v319 = vadd.f32 0.0, %v318
  %v320 = vpop.f32.mrf.mxu0
  %v321 = vpop.f32.mrf.mxu0
  %v322 = vadd.f32 0.0, %v321
  %v323 = vpop.f32.mrf.mxu0
  %324 = vdwg.mxu0
  %v329 = vunpack.c.l.b16 %v223
  %v330 = vunpack.c.l.b16 %v224
  %v331 = vunpack.c.l.b16 %v225
  %v332 = vunpack.c.l.b16 %v226
  %v333 = vpack.c.b16 %v330, %v329
  %v334 = vpack.c.b16 %v332, %v331
  %v338 = vsel %vm247, %v137, 0
  %v341 = vsel %vm247, %v138, 0
  %v344 = vsel %vm247, %v139, 0
  %v347 = vsel %vm247, %v140, 0
  %349 = vmatprep.subr.bf16.mxu0 0
  %350 = vmatpush1.bf16.msra.mxu0 0
  %351 = vmatprep.subr.bf16.mxu0 0
  %352 = vmatpush1.bf16.msra.mxu0 0
  %353 = vmatprep.subr.bf16.mxu0 0
  %354 = vmatpush1.bf16.msra.mxu0 0
  %355 = vmatprep.subr.bf16.mxu0 0
  %356 = vmatpush1.bf16.msra.mxu0 0
  %357 = vmatprep.subr.bf16.mxu0 0
  %358 = vmatpush1.bf16.msra.mxu0 0
  %359 = vmatprep.subr.bf16.mxu0 0
  %360 = vmatpush1.bf16.msra.mxu0 0
  %361 = vmatprep.subr.bf16.mxu0 0
  %362 = vmatpush1.bf16.msra.mxu0 %v334
  %363 = vmatprep.subr.bf16.mxu0 0
  %364 = vmatpush1.bf16.msra.mxu0 %v333
  %365 = vmatprep.subr.bf16.mxu0 0
  %366 = vmatpush2.bf16.msra.mxu0 0
  %367 = vmatprep.subr.bf16.mxu0 0
  %368 = vmatpush2.bf16.msra.mxu0 0
  %369 = vmatprep.subr.bf16.mxu0 0
  %370 = vmatpush2.bf16.msra.mxu0 0
  %371 = vmatprep.subr.bf16.mxu0 0
  %372 = vmatpush2.bf16.msra.mxu0 0
  %373 = vmatprep.subr.bf16.mxu0 0
  %374 = vmatpush2.bf16.msra.mxu0 0
  %375 = vmatprep.subr.bf16.mxu0 0
  %376 = vmatpush2.bf16.msra.mxu0 0
  %377 = vmatprep.subr.bf16.mxu0 0
  %378 = vmatpush2.bf16.msra.mxu0 0
  %379 = vmatprep.subr.bf16.mxu0 0
  %380 = vmatpush2.bf16.msra.mxu0 0
  %381 = vmatprep.mubr.bf16.mxu0 0
  %382 = vmatmul.mubr.bf16.gmra.mxu0 %v338
  %v383 = vpop.f32.mrf.mxu0
  %v384 = vadd.f32 %v295, %v383
  %v385 = vpop.f32.mrf.mxu0
  %v386 = vpop.f32.mrf.mxu0
  %v387 = vadd.f32 %v298, %v386
  %v388 = vpop.f32.mrf.mxu0
  %389 = vmatprep.mubr.bf16.mxu0 0
  %390 = vmatmul.mubr.bf16.gmra.mxu0 %v341
  %v391 = vpop.f32.mrf.mxu0
  %v392 = vadd.f32 %v303, %v391
  %v393 = vpop.f32.mrf.mxu0
  %v394 = vpop.f32.mrf.mxu0
  %v395 = vadd.f32 %v306, %v394
  %v396 = vpop.f32.mrf.mxu0
  %397 = vmatprep.mubr.bf16.mxu0 0
  %398 = vmatmul.mubr.bf16.gmra.mxu0 %v344
  %v399 = vpop.f32.mrf.mxu0
  %v400 = vadd.f32 %v311, %v399
  %v401 = vpop.f32.mrf.mxu0
  %v402 = vpop.f32.mrf.mxu0
  %v403 = vadd.f32 %v314, %v402
  %v404 = vpop.f32.mrf.mxu0
  %405 = vmatprep.mubr.bf16.mxu0 0
  %406 = vmatmul.mubr.bf16.gmra.mxu0 %v347
  %v407 = vpop.f32.mrf.mxu0
  %v408 = vadd.f32 %v319, %v407
  %v409 = vpop.f32.mrf.mxu0
  %v410 = vpop.f32.mrf.mxu0
  %v411 = vadd.f32 %v322, %v410
  %v412 = vpop.f32.mrf.mxu0
  %413 = vdwg.mxu0
  %414 = vst [vmem:[#allocation2] sm:$0xff] %v384
  %415 = vst [vmem:[#allocation2 + $0x8] sm:$0xff] %v387
  %416 = vst [vmem:[#allocation2 + $0x10] sm:$0xff] %v392
  %417 = vst [vmem:[#allocation2 + $0x18] sm:$0xff] %v395
  %418 = vst [vmem:[#allocation2 + $0x20] sm:$0xff] %v400
  %419 = vst [vmem:[#allocation2 + $0x28] sm:$0xff] %v403
  %420 = vst [vmem:[#allocation2 + $0x30] sm:$0xff] %v408
  %421 = vst [vmem:[#allocation2 + $0x38] sm:$0xff] %v411
  %v422 = vld [vmem:[%s6] sm:$0x1]
  %v424 = vlaneseq
  %v425 = vshrl.u32 %v424, 7
  %v426 = vsub.s32 0, %v425
  %v427 = vrot.slane %v422, %v426
  %v428 = vld [vmem:[%s5] sm:$0xf]
  %v429 = vld [vmem:[%s5 + $0x4] sm:$0xf]
  %v430 = vld [vmem:[%s5 + $0x8] sm:$0xf]
  %v431 = vld [vmem:[%s5 + $0xc] sm:$0xf]
  %v432 = vld [vmem:[#allocation2] sm:$0xff]
  %v437 = vunpack.c.l.b16 %v428
  %v438 = vunpack.c.l.b16 %v429
  %v439 = vunpack.c.l.b16 %v430
  %v440 = vunpack.c.l.b16 %v431
  %v441 = vpack.c.b16 %v438, %v437
  %v442 = vpack.c.b16 %v440, %v439
  %v446 = vsel %vm247, 0, 0
  %448 = vmatprep.subr.bf16.mxu0 0
  %449 = vmatpush1.bf16.msra.mxu0 0
  %450 = vmatprep.subr.bf16.mxu0 0
  %451 = vmatpush1.bf16.msra.mxu0 0
  %452 = vmatprep.subr.bf16.mxu0 0
  %453 = vmatpush1.bf16.msra.mxu0 0
  %454 = vmatprep.subr.bf16.mxu0 0
  %455 = vmatpush1.bf16.msra.mxu0 0
  %456 = vmatprep.subr.bf16.mxu0 0
  %457 = vmatpush1.bf16.msra.mxu0 0
  %458 = vmatprep.subr.bf16.mxu0 0
  %459 = vmatpush1.bf16.msra.mxu0 0
  %460 = vmatprep.subr.bf16.mxu0 0
  %461 = vmatpush1.bf16.msra.mxu0 %v442
  %462 = vmatprep.subr.bf16.mxu0 0
  %463 = vmatpush1.bf16.msra.mxu0 %v441
  %464 = vmatprep.subr.bf16.mxu0 0
  %465 = vmatpush2.bf16.msra.mxu0 0
  %466 = vmatprep.subr.bf16.mxu0 0
  %467 = vmatpush2.bf16.msra.mxu0 0
  %468 = vmatprep.subr.bf16.mxu0 0
  %469 = vmatpush2.bf16.msra.mxu0 0
  %470 = vmatprep.subr.bf16.mxu0 0
  %471 = vmatpush2.bf16.msra.mxu0 0
  %472 = vmatprep.subr.bf16.mxu0 0
  %473 = vmatpush2.bf16.msra.mxu0 0
  %474 = vmatprep.subr.bf16.mxu0 0
  %475 = vmatpush2.bf16.msra.mxu0 0
  %476 = vmatprep.subr.bf16.mxu0 0
  %477 = vmatpush2.bf16.msra.mxu0 0
  %478 = vmatprep.subr.bf16.mxu0 0
  %479 = vmatpush2.bf16.msra.mxu0 0
  %480 = vmatprep.mubr.bf16.mxu0 0
  %481 = vmatmul.mubr.bf16.gmra.mxu0 %v446
  %v482 = vpop.f32.mrf.mxu0
  %v483 = vadd.f32 0.0, %v482
  %v484 = vpop.f32.mrf.mxu0
  %v485 = vpop.f32.mrf.mxu0
  %v486 = vpop.f32.mrf.mxu0
  %487 = vdwg.mxu0
  %v488 = vadd.f32 %v432, %v483
  %v489 = vxor.u32 %v488, 2147483648
  %v490 = vmul.f32 %v489, 1.442695
  %v491 = vpow.pop %v490
  %v492 = vadd.f32 %v491, 1.0
  %v493 = vrcp.pop %v492
  %v494 = vmul.f32 1.0, %v493
  %495 = vrot.lane.b32.xlu0 %v427, 64
  %v496 = vpop.permute.xlu0 %495
  %v498 = vadd.f32 %v483, %v496
  %500 = vrot.lane.b32.xlu0 %v498, 64
  %v501 = vpop.permute.xlu0 %500
  %v503 = vmul.f32 %v494, %v501
  %505 = vrot.lane.b32.xlu0 %v503, 64
  %v506 = vpop.permute.xlu0 %505
  %v508 = vadd.f32 %v432, %v506
  %v509 = vtanh.pop %v508
  %v510 = vsub.f32 1.0, %v494
  %512 = vrot.lane.b32.xlu0 %v509, 96
  %v513 = vpop.permute.xlu0 %512
  %v515 = vmul.f32 %v510, %v513
  %v516 = vmul.f32 %v494, 0.0
  %v517 = vadd.f32 %v515, %v516
  %519 = vrot.lane.b32.xlu0 %v517, 96
  %v520 = vpop.permute.xlu0 %519
  %522 = vst.msk [vmem:[#allocation3] sm:$0xff] %vm247, %v520
  %v523 = vld [vmem:[#allocation2 + $0x8] sm:$0xff]
  %v524 = vpack.c.bf16 %v517, %v517
  %526 = vrot.lane.b32.xlu0 %v524, 96
  %v527 = vpop.permute.xlu0 %526
  %v529 = vsel %vm247, %v527, 0
  %531 = vmatprep.subr.bf16.mxu0 0
  %532 = vmatpush1.bf16.msra.mxu0 0
  %533 = vmatprep.subr.bf16.mxu0 0
  %534 = vmatpush1.bf16.msra.mxu0 0
  %535 = vmatprep.subr.bf16.mxu0 0
  %536 = vmatpush1.bf16.msra.mxu0 0
  %537 = vmatprep.subr.bf16.mxu0 0
  %538 = vmatpush1.bf16.msra.mxu0 0
  %539 = vmatprep.subr.bf16.mxu0 0
  %540 = vmatpush1.bf16.msra.mxu0 0
  %541 = vmatprep.subr.bf16.mxu0 0
  %542 = vmatpush1.bf16.msra.mxu0 0
  %543 = vmatprep.subr.bf16.mxu0 0
  %544 = vmatpush1.bf16.msra.mxu0 %v442
  %545 = vmatprep.subr.bf16.mxu0 0
  %546 = vmatpush1.bf16.msra.mxu0 %v441
  %547 = vmatprep.subr.bf16.mxu0 0
  %548 = vmatpush2.bf16.msra.mxu0 0
  %549 = vmatprep.subr.bf16.mxu0 0
  %550 = vmatpush2.bf16.msra.mxu0 0
  %551 = vmatprep.subr.bf16.mxu0 0
  %552 = vmatpush2.bf16.msra.mxu0 0
  %553 = vmatprep.subr.bf16.mxu0 0
  %554 = vmatpush2.bf16.msra.mxu0 0
  %555 = vmatprep.subr.bf16.mxu0 0
  %556 = vmatpush2.bf16.msra.mxu0 0
  %557 = vmatprep.subr.bf16.mxu0 0
  %558 = vmatpush2.bf16.msra.mxu0 0
  %559 = vmatprep.subr.bf16.mxu0 0
  %560 = vmatpush2.bf16.msra.mxu0 0
  %561 = vmatprep.subr.bf16.mxu0 0
  %562 = vmatpush2.bf16.msra.mxu0 0
  %563 = vmatprep.mubr.bf16.mxu0 0
  %564 = vmatmul.mubr.bf16.gmra.mxu0 %v529
  %v565 = vpop.f32.mrf.mxu0
  %v566 = vadd.f32 0.0, %v565
  %v567 = vpop.f32.mrf.mxu0
  %v568 = vpop.f32.mrf.mxu0
  %v569 = vpop.f32.mrf.mxu0
  %570 = vdwg.mxu0
  %v571 = vadd.f32 %v523, %v566
  %v572 = vxor.u32 %v571, 2147483648
  %v573 = vmul.f32 %v572, 1.442695
  %v574 = vpow.pop %v573
  %v575 = vadd.f32 %v574, 1.0
  %v576 = vrcp.pop %v575
  %v577 = vmul.f32 1.0, %v576
  %v578 = vadd.f32 %v566, %v496
  %580 = vrot.lane.b32.xlu0 %v578, 64
  %v581 = vpop.permute.xlu0 %580
  %v583 = vmul.f32 %v577, %v581
  %585 = vrot.lane.b32.xlu0 %v583, 64
  %v586 = vpop.permute.xlu0 %585
  %v588 = vadd.f32 %v523, %v586
  %v589 = vtanh.pop %v588
  %v590 = vsub.f32 1.0, %v577
  %592 = vrot.lane.b32.xlu0 %v589, 96
  %v593 = vpop.permute.xlu0 %592
  %v595 = vmul.f32 %v590, %v593
  %v596 = vmul.f32 %v577, %v517
  %v597 = vadd.f32 %v595, %v596
  %599 = vrot.lane.b32.xlu0 %v597, 96
  %v600 = vpop.permute.xlu0 %599
  %602 = vst.msk [vmem:[#allocation3 + $0x8] sm:$0xff] %vm247, %v600
  %v603 = vld [vmem:[#allocation2 + $0x10] sm:$0xff]
  %v604 = vpack.c.bf16 %v597, %v597
  %606 = vrot.lane.b32.xlu0 %v604, 96
  %v607 = vpop.permute.xlu0 %606
  %v609 = vsel %vm247, %v607, 0
  %611 = vmatprep.subr.bf16.mxu0 0
  %612 = vmatpush1.bf16.msra.mxu0 0
  %613 = vmatprep.subr.bf16.mxu0 0
  %614 = vmatpush1.bf16.msra.mxu0 0
  %615 = vmatprep.subr.bf16.mxu0 0
  %616 = vmatpush1.bf16.msra.mxu0 0
  %617 = vmatprep.subr.bf16.mxu0 0
  %618 = vmatpush1.bf16.msra.mxu0 0
  %619 = vmatprep.subr.bf16.mxu0 0
  %620 = vmatpush1.bf16.msra.mxu0 0
  %621 = vmatprep.subr.bf16.mxu0 0
  %622 = vmatpush1.bf16.msra.mxu0 0
  %623 = vmatprep.subr.bf16.mxu0 0
  %624 = vmatpush1.bf16.msra.mxu0 %v442
  %625 = vmatprep.subr.bf16.mxu0 0
  %626 = vmatpush1.bf16.msra.mxu0 %v441
  %627 = vmatprep.subr.bf16.mxu0 0
  %628 = vmatpush2.bf16.msra.mxu0 0
  %629 = vmatprep.subr.bf16.mxu0 0
  %630 = vmatpush2.bf16.msra.mxu0 0
  %631 = vmatprep.subr.bf16.mxu0 0
  %632 = vmatpush2.bf16.msra.mxu0 0
  %633 = vmatprep.subr.bf16.mxu0 0
  %634 = vmatpush2.bf16.msra.mxu0 0
  %635 = vmatprep.subr.bf16.mxu0 0
  %636 = vmatpush2.bf16.msra.mxu0 0
  %637 = vmatprep.subr.bf16.mxu0 0
  %638 = vmatpush2.bf16.msra.mxu0 0
  %639 = vmatprep.subr.bf16.mxu0 0
  %640 = vmatpush2.bf16.msra.mxu0 0
  %641 = vmatprep.subr.bf16.mxu0 0
  %642 = vmatpush2.bf16.msra.mxu0 0
  %643 = vmatprep.mubr.bf16.mxu0 0
  %644 = vmatmul.mubr.bf16.gmra.mxu0 %v609
  %v645 = vpop.f32.mrf.mxu0
  %v646 = vadd.f32 0.0, %v645
  %v647 = vpop.f32.mrf.mxu0
  %v648 = vpop.f32.mrf.mxu0
  %v649 = vpop.f32.mrf.mxu0
  %650 = vdwg.mxu0
  %v651 = vadd.f32 %v603, %v646
  %v652 = vxor.u32 %v651, 2147483648
  %v653 = vmul.f32 %v652, 1.442695
  %v654 = vpow.pop %v653
  %v655 = vadd.f32 %v654, 1.0
  %v656 = vrcp.pop %v655
  %v657 = vmul.f32 1.0, %v656
  %v658 = vadd.f32 %v646, %v496
  %660 = vrot.lane.b32.xlu0 %v658, 64
  %v661 = vpop.permute.xlu0 %660
  %v663 = vmul.f32 %v657, %v661
  %665 = vrot.lane.b32.xlu0 %v663, 64
  %v666 = vpop.permute.xlu0 %665
  %v668 = vadd.f32 %v603, %v666
  %v669 = vtanh.pop %v668
  %v670 = vsub.f32 1.0, %v657
  %672 = vrot.lane.b32.xlu0 %v669, 96
  %v673 = vpop.permute.xlu0 %672
  %v675 = vmul.f32 %v670, %v673
  %v676 = vmul.f32 %v657, %v597
  %v677 = vadd.f32 %v675, %v676
  %679 = vrot.lane.b32.xlu0 %v677, 96
  %v680 = vpop.permute.xlu0 %679
  %682 = vst.msk [vmem:[#allocation3 + $0x10] sm:$0xff] %vm247, %v680
  %v683 = vld [vmem:[#allocation2 + $0x18] sm:$0xff]
  %v684 = vpack.c.bf16 %v677, %v677
  %686 = vrot.lane.b32.xlu0 %v684, 96
  %v687 = vpop.permute.xlu0 %686
  %v689 = vsel %vm247, %v687, 0
  %691 = vmatprep.subr.bf16.mxu0 0
  %692 = vmatpush1.bf16.msra.mxu0 0
  %693 = vmatprep.subr.bf16.mxu0 0
  %694 = vmatpush1.bf16.msra.mxu0 0
  %695 = vmatprep.subr.bf16.mxu0 0
  %696 = vmatpush1.bf16.msra.mxu0 0
  %697 = vmatprep.subr.bf16.mxu0 0
  %698 = vmatpush1.bf16.msra.mxu0 0
  %699 = vmatprep.subr.bf16.mxu0 0
  %700 = vmatpush1.bf16.msra.mxu0 0
  %701 = vmatprep.subr.bf16.mxu0 0
  %702 = vmatpush1.bf16.msra.mxu0 0
  %703 = vmatprep.subr.bf16.mxu0 0
  %704 = vmatpush1.bf16.msra.mxu0 %v442
  %705 = vmatprep.subr.bf16.mxu0 0
  %706 = vmatpush1.bf16.msra.mxu0 %v441
  %707 = vmatprep.subr.bf16.mxu0 0
  %708 = vmatpush2.bf16.msra.mxu0 0
  %709 = vmatprep.subr.bf16.mxu0 0
  %710 = vmatpush2.bf16.msra.mxu0 0
  %711 = vmatprep.subr.bf16.mxu0 0
  %712 = vmatpush2.bf16.msra.mxu0 0
  %713 = vmatprep.subr.bf16.mxu0 0
  %714 = vmatpush2.bf16.msra.mxu0 0
  %715 = vmatprep.subr.bf16.mxu0 0
  %716 = vmatpush2.bf16.msra.mxu0 0
  %717 = vmatprep.subr.bf16.mxu0 0
  %718 = vmatpush2.bf16.msra.mxu0 0
  %719 = vmatprep.subr.bf16.mxu0 0
  %720 = vmatpush2.bf16.msra.mxu0 0
  %721 = vmatprep.subr.bf16.mxu0 0
  %722 = vmatpush2.bf16.msra.mxu0 0
  %723 = vmatprep.mubr.bf16.mxu0 0
  %724 = vmatmul.mubr.bf16.gmra.mxu0 %v689
  %v725 = vpop.f32.mrf.mxu0
  %v726 = vadd.f32 0.0, %v725
  %v727 = vpop.f32.mrf.mxu0
  %v728 = vpop.f32.mrf.mxu0
  %v729 = vpop.f32.mrf.mxu0
  %730 = vdwg.mxu0
  %v731 = vadd.f32 %v683, %v726
  %v732 = vxor.u32 %v731, 2147483648
  %v733 = vmul.f32 %v732, 1.442695
  %v734 = vpow.pop %v733
  %v735 = vadd.f32 %v734, 1.0
  %v736 = vrcp.pop %v735
  %v737 = vmul.f32 1.0, %v736
  %v738 = vadd.f32 %v726, %v496
  %740 = vrot.lane.b32.xlu0 %v738, 64
  %v741 = vpop.permute.xlu0 %740
  %v743 = vmul.f32 %v737, %v741
  %745 = vrot.lane.b32.xlu0 %v743, 64
  %v746 = vpop.permute.xlu0 %745
  %v748 = vadd.f32 %v683, %v746
  %v749 = vtanh.pop %v748
  %v750 = vsub.f32 1.0, %v737
  %752 = vrot.lane.b32.xlu0 %v749, 96
  %v753 = vpop.permute.xlu0 %752
  %v755 = vmul.f32 %v750, %v753
  %v756 = vmul.f32 %v737, %v677
  %v757 = vadd.f32 %v755, %v756
  %759 = vrot.lane.b32.xlu0 %v757, 96
  %v760 = vpop.permute.xlu0 %759
  %762 = vst.msk [vmem:[#allocation3 + $0x18] sm:$0xff] %vm247, %v760
  %v763 = vld [vmem:[#allocation2 + $0x20] sm:$0xff]
  %v764 = vpack.c.bf16 %v757, %v757
  %766 = vrot.lane.b32.xlu0 %v764, 96
  %v767 = vpop.permute.xlu0 %766
  %v769 = vsel %vm247, %v767, 0
  %771 = vmatprep.subr.bf16.mxu0 0
  %772 = vmatpush1.bf16.msra.mxu0 0
  %773 = vmatprep.subr.bf16.mxu0 0
  %774 = vmatpush1.bf16.msra.mxu0 0
  %775 = vmatprep.subr.bf16.mxu0 0
  %776 = vmatpush1.bf16.msra.mxu0 0
  %777 = vmatprep.subr.bf16.mxu0 0
  %778 = vmatpush1.bf16.msra.mxu0 0
  %779 = vmatprep.subr.bf16.mxu0 0
  %780 = vmatpush1.bf16.msra.mxu0 0
  %781 = vmatprep.subr.bf16.mxu0 0
  %782 = vmatpush1.bf16.msra.mxu0 0
  %783 = vmatprep.subr.bf16.mxu0 0
  %784 = vmatpush1.bf16.msra.mxu0 %v442
  %785 = vmatprep.subr.bf16.mxu0 0
  %786 = vmatpush1.bf16.msra.mxu0 %v441
  %787 = vmatprep.subr.bf16.mxu0 0
  %788 = vmatpush2.bf16.msra.mxu0 0
  %789 = vmatprep.subr.bf16.mxu0 0
  %790 = vmatpush2.bf16.msra.mxu0 0
  %791 = vmatprep.subr.bf16.mxu0 0
  %792 = vmatpush2.bf16.msra.mxu0 0
  %793 = vmatprep.subr.bf16.mxu0 0
  %794 = vmatpush2.bf16.msra.mxu0 0
  %795 = vmatprep.subr.bf16.mxu0 0
  %796 = vmatpush2.bf16.msra.mxu0 0
  %797 = vmatprep.subr.bf16.mxu0 0
  %798 = vmatpush2.bf16.msra.mxu0 0
  %799 = vmatprep.subr.bf16.mxu0 0
  %800 = vmatpush2.bf16.msra.mxu0 0
  %801 = vmatprep.subr.bf16.mxu0 0
  %802 = vmatpush2.bf16.msra.mxu0 0
  %803 = vmatprep.mubr.bf16.mxu0 0
  %804 = vmatmul.mubr.bf16.gmra.mxu0 %v769
  %v805 = vpop.f32.mrf.mxu0
  %v806 = vadd.f32 0.0, %v805
  %v807 = vpop.f32.mrf.mxu0
  %v808 = vpop.f32.mrf.mxu0
  %v809 = vpop.f32.mrf.mxu0
  %810 = vdwg.mxu0
  %v811 = vadd.f32 %v763, %v806
  %v812 = vxor.u32 %v811, 2147483648
  %v813 = vmul.f32 %v812, 1.442695
  %v814 = vpow.pop %v813
  %v815 = vadd.f32 %v814, 1.0
  %v816 = vrcp.pop %v815
  %v817 = vmul.f32 1.0, %v816
  %v818 = vadd.f32 %v806, %v496
  %820 = vrot.lane.b32.xlu0 %v818, 64
  %v821 = vpop.permute.xlu0 %820
  %v823 = vmul.f32 %v817, %v821
  %825 = vrot.lane.b32.xlu0 %v823, 64
  %v826 = vpop.permute.xlu0 %825
  %v828 = vadd.f32 %v763, %v826
  %v829 = vtanh.pop %v828
  %v830 = vsub.f32 1.0, %v817
  %832 = vrot.lane.b32.xlu0 %v829, 96
  %v833 = vpop.permute.xlu0 %832
  %v835 = vmul.f32 %v830, %v833
  %v836 = vmul.f32 %v817, %v757
  %v837 = vadd.f32 %v835, %v836
  %839 = vrot.lane.b32.xlu0 %v837, 96
  %v840 = vpop.permute.xlu0 %839
  %842 = vst.msk [vmem:[#allocation3 + $0x20] sm:$0xff] %vm247, %v840
  %v843 = vld [vmem:[#allocation2 + $0x28] sm:$0xff]
  %v844 = vpack.c.bf16 %v837, %v837
  %846 = vrot.lane.b32.xlu0 %v844, 96
  %v847 = vpop.permute.xlu0 %846
  %v849 = vsel %vm247, %v847, 0
  %851 = vmatprep.subr.bf16.mxu0 0
  %852 = vmatpush1.bf16.msra.mxu0 0
  %853 = vmatprep.subr.bf16.mxu0 0
  %854 = vmatpush1.bf16.msra.mxu0 0
  %855 = vmatprep.subr.bf16.mxu0 0
  %856 = vmatpush1.bf16.msra.mxu0 0
  %857 = vmatprep.subr.bf16.mxu0 0
  %858 = vmatpush1.bf16.msra.mxu0 0
  %859 = vmatprep.subr.bf16.mxu0 0
  %860 = vmatpush1.bf16.msra.mxu0 0
  %861 = vmatprep.subr.bf16.mxu0 0
  %862 = vmatpush1.bf16.msra.mxu0 0
  %863 = vmatprep.subr.bf16.mxu0 0
  %864 = vmatpush1.bf16.msra.mxu0 %v442
  %865 = vmatprep.subr.bf16.mxu0 0
  %866 = vmatpush1.bf16.msra.mxu0 %v441
  %867 = vmatprep.subr.bf16.mxu0 0
  %868 = vmatpush2.bf16.msra.mxu0 0
  %869 = vmatprep.subr.bf16.mxu0 0
  %870 = vmatpush2.bf16.msra.mxu0 0
  %871 = vmatprep.subr.bf16.mxu0 0
  %872 = vmatpush2.bf16.msra.mxu0 0
  %873 = vmatprep.subr.bf16.mxu0 0
  %874 = vmatpush2.bf16.msra.mxu0 0
  %875 = vmatprep.subr.bf16.mxu0 0
  %876 = vmatpush2.bf16.msra.mxu0 0
  %877 = vmatprep.subr.bf16.mxu0 0
  %878 = vmatpush2.bf16.msra.mxu0 0
  %879 = vmatprep.subr.bf16.mxu0 0
  %880 = vmatpush2.bf16.msra.mxu0 0
  %881 = vmatprep.subr.bf16.mxu0 0
  %882 = vmatpush2.bf16.msra.mxu0 0
  %883 = vmatprep.mubr.bf16.mxu0 0
  %884 = vmatmul.mubr.bf16.gmra.mxu0 %v849
  %v885 = vpop.f32.mrf.mxu0
  %v886 = vadd.f32 0.0, %v885
  %v887 = vpop.f32.mrf.mxu0
  %v888 = vpop.f32.mrf.mxu0
  %v889 = vpop.f32.mrf.mxu0
  %890 = vdwg.mxu0
  %v891 = vadd.f32 %v843, %v886
  %v892 = vxor.u32 %v891, 2147483648
  %v893 = vmul.f32 %v892, 1.442695
  %v894 = vpow.pop %v893
  %v895 = vadd.f32 %v894, 1.0
  %v896 = vrcp.pop %v895
  %v897 = vmul.f32 1.0, %v896
  %v898 = vadd.f32 %v886, %v496
  %900 = vrot.lane.b32.xlu0 %v898, 64
  %v901 = vpop.permute.xlu0 %900
  %v903 = vmul.f32 %v897, %v901
  %905 = vrot.lane.b32.xlu0 %v903, 64
  %v906 = vpop.permute.xlu0 %905
  %v908 = vadd.f32 %v843, %v906
  %v909 = vtanh.pop %v908
  %v910 = vsub.f32 1.0, %v897
  %912 = vrot.lane.b32.xlu0 %v909, 96
  %v913 = vpop.permute.xlu0 %912
  %v915 = vmul.f32 %v910, %v913
  %v916 = vmul.f32 %v897, %v837
  %v917 = vadd.f32 %v915, %v916
  %919 = vrot.lane.b32.xlu0 %v917, 96
  %v920 = vpop.permute.xlu0 %919
  %922 = vst.msk [vmem:[#allocation3 + $0x28] sm:$0xff] %vm247, %v920
  %v923 = vld [vmem:[#allocation2 + $0x30] sm:$0xff]
  %v924 = vpack.c.bf16 %v917, %v917
  %926 = vrot.lane.b32.xlu0 %v924, 96
  %v927 = vpop.permute.xlu0 %926
  %v929 = vsel %vm247, %v927, 0
  %931 = vmatprep.subr.bf16.mxu0 0
  %932 = vmatpush1.bf16.msra.mxu0 0
  %933 = vmatprep.subr.bf16.mxu0 0
  %934 = vmatpush1.bf16.msra.mxu0 0
  %935 = vmatprep.subr.bf16.mxu0 0
  %936 = vmatpush1.bf16.msra.mxu0 0
  %937 = vmatprep.subr.bf16.mxu0 0
  %938 = vmatpush1.bf16.msra.mxu0 0
  %939 = vmatprep.subr.bf16.mxu0 0
  %940 = vmatpush1.bf16.msra.mxu0 0
  %941 = vmatprep.subr.bf16.mxu0 0
  %942 = vmatpush1.bf16.msra.mxu0 0
  %943 = vmatprep.subr.bf16.mxu0 0
  %944 = vmatpush1.bf16.msra.mxu0 %v442
  %945 = vmatprep.subr.bf16.mxu0 0
  %946 = vmatpush1.bf16.msra.mxu0 %v441
  %947 = vmatprep.subr.bf16.mxu0 0
  %948 = vmatpush2.bf16.msra.mxu0 0
  %949 = vmatprep.subr.bf16.mxu0 0
  %950 = vmatpush2.bf16.msra.mxu0 0
  %951 = vmatprep.subr.bf16.mxu0 0
  %952 = vmatpush2.bf16.msra.mxu0 0
  %953 = vmatprep.subr.bf16.mxu0 0
  %954 = vmatpush2.bf16.msra.mxu0 0
  %955 = vmatprep.subr.bf16.mxu0 0
  %956 = vmatpush2.bf16.msra.mxu0 0
  %957 = vmatprep.subr.bf16.mxu0 0
  %958 = vmatpush2.bf16.msra.mxu0 0
  %959 = vmatprep.subr.bf16.mxu0 0
  %960 = vmatpush2.bf16.msra.mxu0 0
  %961 = vmatprep.subr.bf16.mxu0 0
  %962 = vmatpush2.bf16.msra.mxu0 0
  %963 = vmatprep.mubr.bf16.mxu0 0
  %964 = vmatmul.mubr.bf16.gmra.mxu0 %v929
  %v965 = vpop.f32.mrf.mxu0
  %v966 = vadd.f32 0.0, %v965
  %v967 = vpop.f32.mrf.mxu0
  %v968 = vpop.f32.mrf.mxu0
  %v969 = vpop.f32.mrf.mxu0
  %970 = vdwg.mxu0
  %v971 = vadd.f32 %v923, %v966
  %v972 = vxor.u32 %v971, 2147483648
  %v973 = vmul.f32 %v972, 1.442695
  %v974 = vpow.pop %v973
  %v975 = vadd.f32 %v974, 1.0
  %v976 = vrcp.pop %v975
  %v977 = vmul.f32 1.0, %v976
  %v978 = vadd.f32 %v966, %v496
  %980 = vrot.lane.b32.xlu0 %v978, 64
  %v981 = vpop.permute.xlu0 %980
  %v983 = vmul.f32 %v977, %v981
  %985 = vrot.lane.b32.xlu0 %v983, 64
  %v986 = vpop.permute.xlu0 %985
  %v988 = vadd.f32 %v923, %v986
  %v989 = vtanh.pop %v988
  %v990 = vsub.f32 1.0, %v977
  %992 = vrot.lane.b32.xlu0 %v989, 96
  %v993 = vpop.permute.xlu0 %992
  %v995 = vmul.f32 %v990, %v993
  %v996 = vmul.f32 %v977, %v917
  %v997 = vadd.f32 %v995, %v996
  %999 = vrot.lane.b32.xlu0 %v997, 96
  %v1000 = vpop.permute.xlu0 %999
  %1002 = vst.msk [vmem:[#allocation3 + $0x30] sm:$0xff] %vm247, %v1000
  %v1003 = vld [vmem:[#allocation2 + $0x38] sm:$0xff]
  %v1004 = vpack.c.bf16 %v997, %v997
  %1006 = vrot.lane.b32.xlu0 %v1004, 96
  %v1007 = vpop.permute.xlu0 %1006
  %v1009 = vsel %vm247, %v1007, 0
  %1011 = vmatprep.subr.bf16.mxu0 0
  %1012 = vmatpush1.bf16.msra.mxu0 0
  %1013 = vmatprep.subr.bf16.mxu0 0
  %1014 = vmatpush1.bf16.msra.mxu0 0
  %1015 = vmatprep.subr.bf16.mxu0 0
  %1016 = vmatpush1.bf16.msra.mxu0 0
  %1017 = vmatprep.subr.bf16.mxu0 0
  %1018 = vmatpush1.bf16.msra.mxu0 0
  %1019 = vmatprep.subr.bf16.mxu0 0
  %1020 = vmatpush1.bf16.msra.mxu0 0
  %1021 = vmatprep.subr.bf16.mxu0 0
  %1022 = vmatpush1.bf16.msra.mxu0 0
  %1023 = vmatprep.subr.bf16.mxu0 0
  %1024 = vmatpush1.bf16.msra.mxu0 %v442
  %1025 = vmatprep.subr.bf16.mxu0 0
  %1026 = vmatpush1.bf16.msra.mxu0 %v441
  %1027 = vmatprep.subr.bf16.mxu0 0
  %1028 = vmatpush2.bf16.msra.mxu0 0
  %1029 = vmatprep.subr.bf16.mxu0 0
  %1030 = vmatpush2.bf16.msra.mxu0 0
  %1031 = vmatprep.subr.bf16.mxu0 0
  %1032 = vmatpush2.bf16.msra.mxu0 0
  %1033 = vmatprep.subr.bf16.mxu0 0
  %1034 = vmatpush2.bf16.msra.mxu0 0
  %1035 = vmatprep.subr.bf16.mxu0 0
  %1036 = vmatpush2.bf16.msra.mxu0 0
  %1037 = vmatprep.subr.bf16.mxu0 0
  %1038 = vmatpush2.bf16.msra.mxu0 0
  %1039 = vmatprep.subr.bf16.mxu0 0
  %1040 = vmatpush2.bf16.msra.mxu0 0
  %1041 = vmatprep.subr.bf16.mxu0 0
  %1042 = vmatpush2.bf16.msra.mxu0 0
  %1043 = vmatprep.mubr.bf16.mxu0 0
  %1044 = vmatmul.mubr.bf16.gmra.mxu0 %v1009
  %v1045 = vpop.f32.mrf.mxu0
  %v1046 = vadd.f32 0.0, %v1045
  %v1047 = vpop.f32.mrf.mxu0
  %v1048 = vpop.f32.mrf.mxu0
  %v1049 = vpop.f32.mrf.mxu0
  %1050 = vdwg.mxu0
  %v1051 = vadd.f32 %v1003, %v1046
  %v1052 = vxor.u32 %v1051, 2147483648
  %v1053 = vmul.f32 %v1052, 1.442695
  %v1054 = vpow.pop %v1053
  %v1055 = vadd.f32 %v1054, 1.0
  %v1056 = vrcp.pop %v1055
  %v1057 = vmul.f32 1.0, %v1056
  %v1058 = vadd.f32 %v1046, %v496
  %1060 = vrot.lane.b32.xlu0 %v1058, 64
  %v1061 = vpop.permute.xlu0 %1060
  %v1063 = vmul.f32 %v1057, %v1061
  %1065 = vrot.lane.b32.xlu0 %v1063, 64
  %v1066 = vpop.permute.xlu0 %1065
  %v1068 = vadd.f32 %v1003, %v1066
  %v1069 = vtanh.pop %v1068
  %v1070 = vsub.f32 1.0, %v1057
  %1072 = vrot.lane.b32.xlu0 %v1069, 96
  %v1073 = vpop.permute.xlu0 %1072
  %v1075 = vmul.f32 %v1070, %v1073
  %v1076 = vmul.f32 %v1057, %v997
  %v1077 = vadd.f32 %v1075, %v1076
  %1079 = vrot.lane.b32.xlu0 %v1077, 96
  %v1080 = vpop.permute.xlu0 %1079
  %1082 = vst.msk [vmem:[#allocation3 + $0x38] sm:$0xff] %vm247, %v1080
  %v1083 = vld [vmem:[#allocation3] sm:$0xff]
  %v1084 = vld [vmem:[#allocation3 + $0x8] sm:$0xff]
  %v1085 = vld [vmem:[#allocation3 + $0x10] sm:$0xff]
  %v1086 = vld [vmem:[#allocation3 + $0x18] sm:$0xff]
  %v1087 = vld [vmem:[#allocation3 + $0x20] sm:$0xff]
  %v1088 = vld [vmem:[#allocation3 + $0x28] sm:$0xff]
  %v1089 = vld [vmem:[#allocation3 + $0x30] sm:$0xff]
  %v1090 = vld [vmem:[#allocation3 + $0x38] sm:$0xff]
  %v1091 = vpack.c.bf16 %v1084, %v1083
  %v1092 = vpack.c.bf16 %v1086, %v1085
  %v1093 = vpack.c.bf16 %v1088, %v1087
  %v1094 = vpack.c.bf16 %v1090, %v1089
  %v1095 = vld [vmem:[%s7] sm:$0xf]
  %v1096 = vld [vmem:[%s7 + $0x4] sm:$0xf]
  %v1097 = vld [vmem:[%s7 + $0x8] sm:$0xf]
  %v1098 = vld [vmem:[%s7 + $0xc] sm:$0xf]
  %v1099 = vld [vmem:[%s8] sm:$0x1]
  %v1101 = vlaneseq
  %v1102 = vshrl.u32 %v1101, 7
  %v1103 = vsub.s32 0, %v1102
  %v1104 = vrot.slane %v1099, %v1103
  %v1110 = vunpack.c.l.b16 %v1095
  %v1111 = vunpack.c.l.b16 %v1096
  %v1112 = vunpack.c.l.b16 %v1097
  %v1113 = vunpack.c.l.b16 %v1098
  %v1114 = vpack.c.b16 %v1111, %v1110
  %v1115 = vpack.c.b16 %v1113, %v1112
  %v1119 = vsel %vm247, %v1091, 0
  %v1122 = vsel %vm247, %v1092, 0
  %v1125 = vsel %vm247, %v1093, 0
  %v1128 = vsel %vm247, %v1094, 0
  %1130 = vmatprep.subr.bf16.mxu0 0
  %1131 = vmatpush1.bf16.msra.mxu0 0
  %1132 = vmatprep.subr.bf16.mxu0 0
  %1133 = vmatpush1.bf16.msra.mxu0 0
  %1134 = vmatprep.subr.bf16.mxu0 0
  %1135 = vmatpush1.bf16.msra.mxu0 0
  %1136 = vmatprep.subr.bf16.mxu0 0
  %1137 = vmatpush1.bf16.msra.mxu0 0
  %1138 = vmatprep.subr.bf16.mxu0 0
  %1139 = vmatpush1.bf16.msra.mxu0 0
  %1140 = vmatprep.subr.bf16.mxu0 0
  %1141 = vmatpush1.bf16.msra.mxu0 0
  %1142 = vmatprep.subr.bf16.mxu0 0
  %1143 = vmatpush1.bf16.msra.mxu0 %v1115
  %1144 = vmatprep.subr.bf16.mxu0 0
  %1145 = vmatpush1.bf16.msra.mxu0 %v1114
  %1146 = vmatprep.subr.bf16.mxu0 0
  %1147 = vmatpush2.bf16.msra.mxu0 0
  %1148 = vmatprep.subr.bf16.mxu0 0
  %1149 = vmatpush2.bf16.msra.mxu0 0
  %1150 = vmatprep.subr.bf16.mxu0 0
  %1151 = vmatpush2.bf16.msra.mxu0 0
  %1152 = vmatprep.subr.bf16.mxu0 0
  %1153 = vmatpush2.bf16.msra.mxu0 0
  %1154 = vmatprep.subr.bf16.mxu0 0
  %1155 = vmatpush2.bf16.msra.mxu0 0
  %1156 = vmatprep.subr.bf16.mxu0 0
  %1157 = vmatpush2.bf16.msra.mxu0 0
  %1158 = vmatprep.subr.bf16.mxu0 0
  %1159 = vmatpush2.bf16.msra.mxu0 0
  %1160 = vmatprep.subr.bf16.mxu0 0
  %1161 = vmatpush2.bf16.msra.mxu0 0
  %1162 = vmatprep.mubr.bf16.mxu0 0
  %1163 = vmatmul.mubr.bf16.gmra.mxu0 %v1119
  %v1164 = vpop.f32.mrf.mxu0
  %v1165 = vadd.f32 %v1104, %v1164
  %v1166 = vpop.f32.mrf.mxu0
  %v1167 = vpop.f32.mrf.mxu0
  %v1168 = vadd.f32 %v1104, %v1167
  %v1169 = vpop.f32.mrf.mxu0
  %1170 = vmatprep.mubr.bf16.mxu0 0
  %1171 = vmatmul.mubr.bf16.gmra.mxu0 %v1122
  %v1172 = vpop.f32.mrf.mxu0
  %v1173 = vadd.f32 %v1104, %v1172
  %v1174 = vpop.f32.mrf.mxu0
  %v1175 = vpop.f32.mrf.mxu0
  %v1176 = vadd.f32 %v1104, %v1175
  %v1177 = vpop.f32.mrf.mxu0
  %1178 = vmatprep.mubr.bf16.mxu0 0
  %1179 = vmatmul.mubr.bf16.gmra.mxu0 %v1125
  %v1180 = vpop.f32.mrf.mxu0
  %v1181 = vadd.f32 %v1104, %v1180
  %v1182 = vpop.f32.mrf.mxu0
  %v1183 = vpop.f32.mrf.mxu0
  %v1184 = vadd.f32 %v1104, %v1183
  %v1185 = vpop.f32.mrf.mxu0
  %1186 = vmatprep.mubr.bf16.mxu0 0
  %1187 = vmatmul.mubr.bf16.gmra.mxu0 %v1128
  %v1188 = vpop.f32.mrf.mxu0
  %v1189 = vadd.f32 %v1104, %v1188
  %v1190 = vpop.f32.mrf.mxu0
  %v1191 = vpop.f32.mrf.mxu0
  %v1192 = vadd.f32 %v1104, %v1191
  %v1193 = vpop.f32.mrf.mxu0
  %1194 = vdwg.mxu0
  %v1195 = vmax.f32 %v1165, 0.0
  %v1196 = vmax.f32 %v1168, 0.0
  %v1197 = vmax.f32 %v1173, 0.0
  %v1198 = vmax.f32 %v1176, 0.0
  %v1199 = vmax.f32 %v1181, 0.0
  %v1200 = vmax.f32 %v1184, 0.0
  %v1201 = vmax.f32 %v1189, 0.0
  %v1202 = vmax.f32 %v1192, 0.0
  %v1203 = vpack.c.bf16 %v1196, %v1195
  %v1204 = vpack.c.bf16 %v1198, %v1197
  %v1205 = vpack.c.bf16 %v1200, %v1199
  %v1206 = vpack.c.bf16 %v1202, %v1201
  %v1207 = vld [vmem:[%s9] sm:$0xf]
  %v1208 = vld [vmem:[%s9 + $0x4] sm:$0xf]
  %v1209 = vld [vmem:[%s9 + $0x8] sm:$0xf]
  %v1210 = vld [vmem:[%s9 + $0xc] sm:$0xf]
  %v1211 = vld [vmem:[%s9 + $0x10] sm:$0xf]
  %v1212 = vld [vmem:[%s9 + $0x14] sm:$0xf]
  %v1213 = vld [vmem:[%s9 + $0x18] sm:$0xf]
  %v1214 = vld [vmem:[%s9 + $0x1c] sm:$0xf]
  %v1215 = vld [vmem:[%s9 + $0x20] sm:$0xf]
  %v1216 = vld [vmem:[%s9 + $0x24] sm:$0xf]
  %v1217 = vld [vmem:[%s9 + $0x28] sm:$0xf]
  %v1218 = vld [vmem:[%s9 + $0x2c] sm:$0xf]
  %v1219 = vld [vmem:[%s9 + $0x30] sm:$0xf]
  %v1220 = vld [vmem:[%s9 + $0x34] sm:$0xf]
  %v1221 = vld [vmem:[%s9 + $0x38] sm:$0xf]
  %v1222 = vld [vmem:[%s9 + $0x3c] sm:$0xf]
  %v1223 = vld [vmem:[%s10] sm:$0x1]
  %v1225 = vlaneseq
  %v1226 = vshrl.u32 %v1225, 7
  %v1227 = vsub.s32 0, %v1226
  %v1228 = vrot.slane %v1223, %v1227
  %v1246 = vunpack.c.l.b16 %v1207
  %v1247 = vunpack.c.l.b16 %v1208
  %v1248 = vunpack.c.l.b16 %v1209
  %v1249 = vunpack.c.l.b16 %v1210
  %v1250 = vunpack.c.l.b16 %v1211
  %v1251 = vunpack.c.l.b16 %v1212
  %v1252 = vunpack.c.l.b16 %v1213
  %v1253 = vunpack.c.l.b16 %v1214
  %v1254 = vunpack.c.l.b16 %v1215
  %v1255 = vunpack.c.l.b16 %v1216
  %v1256 = vunpack.c.l.b16 %v1217
  %v1257 = vunpack.c.l.b16 %v1218
  %v1258 = vunpack.c.l.b16 %v1219
  %v1259 = vunpack.c.l.b16 %v1220
  %v1260 = vunpack.c.l.b16 %v1221
  %v1261 = vunpack.c.l.b16 %v1222
  %v1262 = vpack.c.b16 %v1247, %v1246
  %v1263 = vpack.c.b16 %v1249, %v1248
  %v1264 = vpack.c.b16 %v1251, %v1250
  %v1265 = vpack.c.b16 %v1253, %v1252
  %v1266 = vpack.c.b16 %v1255, %v1254
  %v1267 = vpack.c.b16 %v1257, %v1256
  %v1268 = vpack.c.b16 %v1259, %v1258
  %v1269 = vpack.c.b16 %v1261, %v1260
  %1278 = vmatprep.subr.bf16.mxu0 0
  %1279 = vmatpush1.bf16.msra.mxu0 %v1269
  %1280 = vmatprep.subr.bf16.mxu0 0
  %1281 = vmatpush1.bf16.msra.mxu0 %v1268
  %1282 = vmatprep.subr.bf16.mxu0 0
  %1283 = vmatpush1.bf16.msra.mxu0 %v1267
  %1284 = vmatprep.subr.bf16.mxu0 0
  %1285 = vmatpush1.bf16.msra.mxu0 %v1266
  %1286 = vmatprep.subr.bf16.mxu0 0
  %1287 = vmatpush1.bf16.msra.mxu0 %v1265
  %1288 = vmatprep.subr.bf16.mxu0 0
  %1289 = vmatpush1.bf16.msra.mxu0 %v1264
  %1290 = vmatprep.subr.bf16.mxu0 0
  %1291 = vmatpush1.bf16.msra.mxu0 %v1263
  %1292 = vmatprep.subr.bf16.mxu0 0
  %1293 = vmatpush1.bf16.msra.mxu0 %v1262
  %1294 = vmatprep.subr.bf16.mxu0 0
  %1295 = vmatpush2.bf16.msra.mxu0 0
  %1296 = vmatprep.subr.bf16.mxu0 0
  %1297 = vmatpush2.bf16.msra.mxu0 0
  %1298 = vmatprep.subr.bf16.mxu0 0
  %1299 = vmatpush2.bf16.msra.mxu0 0
  %1300 = vmatprep.subr.bf16.mxu0 0
  %1301 = vmatpush2.bf16.msra.mxu0 0
  %1302 = vmatprep.subr.bf16.mxu0 0
  %1303 = vmatpush2.bf16.msra.mxu0 0
  %1304 = vmatprep.subr.bf16.mxu0 0
  %1305 = vmatpush2.bf16.msra.mxu0 0
  %1306 = vmatprep.subr.bf16.mxu0 0
  %1307 = vmatpush2.bf16.msra.mxu0 0
  %1308 = vmatprep.subr.bf16.mxu0 0
  %1309 = vmatpush2.bf16.msra.mxu0 0
  %1310 = vmatprep.mubr.bf16.mxu0 0
  %1311 = vmatmul.mubr.bf16.gmra.mxu0 %v1203
  %v1312 = vpop.f32.mrf.mxu0
  %v1313 = vadd.f32 %v1228, %v1312
  %v1314 = vpop.f32.mrf.mxu0
  %v1315 = vpop.f32.mrf.mxu0
  %v1316 = vadd.f32 %v1228, %v1315
  %v1317 = vpop.f32.mrf.mxu0
  %1318 = vmatprep.mubr.bf16.mxu0 0
  %1319 = vmatmul.mubr.bf16.gmra.mxu0 %v1204
  %v1320 = vpop.f32.mrf.mxu0
  %v1321 = vadd.f32 %v1228, %v1320
  %v1322 = vpop.f32.mrf.mxu0
  %v1323 = vpop.f32.mrf.mxu0
  %v1324 = vadd.f32 %v1228, %v1323
  %v1325 = vpop.f32.mrf.mxu0
  %1326 = vmatprep.mubr.bf16.mxu0 0
  %1327 = vmatmul.mubr.bf16.gmra.mxu0 %v1205
  %v1328 = vpop.f32.mrf.mxu0
  %v1329 = vadd.f32 %v1228, %v1328
  %v1330 = vpop.f32.mrf.mxu0
  %v1331 = vpop.f32.mrf.mxu0
  %v1332 = vadd.f32 %v1228, %v1331
  %v1333 = vpop.f32.mrf.mxu0
  %1334 = vmatprep.mubr.bf16.mxu0 0
  %1335 = vmatmul.mubr.bf16.gmra.mxu0 %v1206
  %v1336 = vpop.f32.mrf.mxu0
  %v1337 = vadd.f32 %v1228, %v1336
  %v1338 = vpop.f32.mrf.mxu0
  %v1339 = vpop.f32.mrf.mxu0
  %v1340 = vadd.f32 %v1228, %v1339
  %v1341 = vpop.f32.mrf.mxu0
  %1342 = vdwg.mxu0
  %1343 = vst [vmem:[%s11] sm:$0xff] %v1313
  %1344 = vst [vmem:[%s11 + $0x8] sm:$0xff] %v1316
  %1345 = vst [vmem:[%s11 + $0x10] sm:$0xff] %v1321
  %1346 = vst [vmem:[%s11 + $0x18] sm:$0xff] %v1324
  %1347 = vst [vmem:[%s11 + $0x20] sm:$0xff] %v1329
  %1348 = vst [vmem:[%s11 + $0x28] sm:$0xff] %v1332
  %1349 = vst [vmem:[%s11 + $0x30] sm:$0xff] %v1337
  %1350 = vst [vmem:[%s11 + $0x38] sm:$0xff] %v1340
  // Predicated region
  $region46: #{rnn4rl_forward.1} parent=0 // pred_check
    _
  $region47: #{rnn4rl_forward.1} parent=0 // pred_check_branch
    %1352 = sbr.rel (0) target = $region49
  $region48: #{rnn4rl_forward.1} parent=0 // pred_region
    _
  $region49: #{rnn4rl_forward.1} parent=0 // pred_fallthru
    _
  // Predicated region
  $region50: #{rnn4rl_forward.1} parent=0 // pred_check
    _
  $region51: #{rnn4rl_forward.1} parent=0 // pred_check_branch
    %1354 = sbr.rel (0) target = $region53
  $region52: #{rnn4rl_forward.1} parent=0 // pred_region
    _
  $region53: #{rnn4rl_forward.1} parent=0 // pred_fallthru
    _

</llo_original>
